<compile_context>
chip_gen: v6e
topology: v6e:2x2x1
jax: 0.10.0
libtpu: 0.0.40
codegen_flags: <defaults>
</compile_context>

<pallas_src>
import functools

import numpy as np
import jax
import jax.numpy as jnp
from jax.experimental import pallas as pl
from jax.experimental.pallas import tpu as pltpu


MXU_DTYPE = jnp.bfloat16   # matmul operand dtype (accumulation is always f32)


def _round_up(x, m):
    return (x + m - 1) // m * m


# ----------------------------------------------------------------------------
# Fused per-stage kernel
# ----------------------------------------------------------------------------
def fused_mask_ann_kernel(*refs, meta, geom):
    """Fused MaskANN forward for one batch element.

    Ref order:
      maskf_ref (1, L)            f32 interior mask (1.0 inside image, 0.0 elsewhere)
      xp_ref    (1, Cin, L)       f32 padded-flat input (padding/alignment lanes zero)
      [w_i (Cout, K*K*Cin) bf16, b_i (Cout, 1) f32]  for each stacked conv layer
      wh (NC1+C, C) bf16, bh (NC1+C, 1) f32          fused [mask_layer ; dot_layer]
      mask_out_ref (1, NC1, L) f32
      out_ref      (1, C,   L) f32
      fw_ref  (Cmax, Lbuf)        scratch: padded-flat feature with lane margins
      col_ref (KKCmax, L)         scratch: im2col taps, reused across layers
    """
    Wp, L, marg_al = geom
    n_layers = len(meta)

    maskf_ref = refs[0]
    xp_ref = refs[1]
    layer_refs = [(refs[2 + 2 * i], refs[3 + 2 * i]) for i in range(n_layers)]
    base = 2 + 2 * n_layers
    wh_ref, bh_ref = refs[base], refs[base + 1]
    mask_out_ref = refs[base + 2]
    out_ref = refs[base + 3]
    fw_ref = refs[base + 4]
    col_ref = refs[base + 5]

    cmax, lbuf = fw_ref.shape
    NC1 = mask_out_ref.shape[1]
    C = out_ref.shape[1]

    # Zero ONLY the two margin lane-bands; the interior is overwritten right after.
    fw_ref[:, 0:marg_al] = jnp.zeros((cmax, marg_al), fw_ref.dtype)
    fw_ref[:, marg_al + L:lbuf] = jnp.zeros((cmax, lbuf - marg_al - L), fw_ref.dtype)

    # Hoisted interior mask (single broadcast; all stacked layers share out-channels).
    cout_common = meta[0][4]
    maskb = jnp.broadcast_to(maskf_ref[...], (cout_common, L))      # f32 (cout, L)

    # Stage the input into the shifted-read buffer (only needed if layer 0 has taps).
    cin0 = meta[0][3]
    if meta[0][0] > 1:
        fw_ref[0:cin0, marg_al:marg_al + L] = xp_ref[0].astype(fw_ref.dtype)

    feat = None                                   # f32 value of current layer output
    for li, (K, dil, pad, cin, cout) in enumerate(meta):
        w_ref, b_ref = layer_refs[li]
        if K == 1:
            # 1x1 conv: single zero-offset tap -> reuse the in-register value.
            rhs = (xp_ref[0] if feat is None else feat).astype(MXU_DTYPE)
        else:
            for t in range(K * K):
                kh, kw = t // K, t % K
                off = (kh * dil - pad) * Wp + (kw * dil - pad)
                start = marg_al + off             # static, always in [0, lbuf - L]
                col_ref[t * cin:(t + 1) * cin, :] = (
                    fw_ref[0:cin, start:start + L].astype(col_ref.dtype))
            rhs = col_ref[0:K * K * cin, :].astype(MXU_DTYPE)
        acc = jnp.dot(w_ref[...], rhs,
                      preferred_element_type=jnp.float32) + b_ref[...]
        feat = acc * maskb                        # re-impose the zero padding ring
        # Write back only when the NEXT layer actually reads shifted taps.
        if li + 1 < n_layers and meta[li + 1][0] > 1:
            fw_ref[0:cout, marg_al:marg_al + L] = feat.astype(fw_ref.dtype)

    # Fused heads: one matmul for [mask_layer ; dot_layer], then split the rows.
    heads = jnp.dot(wh_ref[...], feat.astype(MXU_DTYPE),
                    preferred_element_type=jnp.float32) + bh_ref[...]
    mask_out_ref[0] = heads[0:NC1, :]
    dot = jax.nn.sigmoid(heads[NC1:NC1 + C, :])
    out_ref[0] = dot * xp_ref[0]


# ----------------------------------------------------------------------------
# Per-stage wrapper (one pallas_call per MaskANN block)
# ----------------------------------------------------------------------------
def mask_ann_forward(x_nchw, p):
    x = x_nchw.astype(jnp.float32)
    B, Cin, H, W = x.shape
    layers = p["stacked"]

    meta = []
    pg = 0
    cmax = Cin
    kkc_max = 8
    ci = Cin
    for (w, b, dil, pad) in layers:
        K, _, w_cin, co = w.shape
        assert w_cin == ci
        # Geometry assumes 'same' spatial size per layer (true for MaskANN defaults).
        assert 2 * pad == dil * (K - 1), "only 'same'-size convs are supported"
        meta.append((K, dil, pad, ci, co))
        pg = max(pg, pad)
        cmax = max(cmax, co)
        if K > 1:
            kkc_max = max(kkc_max, K * K * ci)
        ci = co
    C = ci
    assert C == Cin, "OUT_feat = dotmap * x requires out_channels == in_channels"
    assert len({m[4] for m in meta}) == 1, "stacked layers must share out_channels"
    NC1 = p["w_mask"].shape[1]

    # Lane-aligned geometry (128-multiple flattened length and margin).
    Hp, Wp = H + 2 * pg, W + 2 * pg
    Lpad = Hp * Wp
    L = _round_up(Lpad, 128)
    marg = pg * Wp + pg
    marg_al = _round_up(max(marg, 1), 128)
    Lbuf = L + 2 * marg_al

    # Scratch dtypes: bf16 where every sublane slice is full-extent or 16-aligned,
    # otherwise f32 (robust lowering); matmuls are bf16 either way.
    conv_cins = [m[3] for m in meta if m[0] > 1]
    col_dtype = MXU_DTYPE if conv_cins and all(c % 16 == 0 for c in conv_cins) \
        else jnp.float32
    fw_exts = list(conv_cins)
    if meta[0][0] > 1:
        fw_exts.append(Cin)
    for li in range(len(meta) - 1):
        if meta[li + 1][0] > 1:
            fw_exts.append(meta[li][4])
    fw_dtype = MXU_DTYPE if all(e == cmax or e % 16 == 0 for e in fw_exts) \
        else jnp.float32

    # Pad ONCE per stage; flatten spatial; zero-extend to the aligned lane length.
    xp = jnp.pad(x, ((0, 0), (0, 0), (pg, pg), (pg, pg))).reshape(B, Cin, Lpad)
    xp = jnp.pad(xp, ((0, 0), (0, 0), (0, L - Lpad)))

    # Static interior mask for the padded-flat, lane-aligned domain.
    m = np.zeros((1, L), np.float32)
    mi = np.zeros((Hp, Wp), np.float32)
    mi[pg:pg + H, pg:pg + W] = 1.0
    m[0, :Lpad] = mi.reshape(-1)
    maskf = jnp.asarray(m)

    # Weights -> (Cout, K*K*Cin) bf16 matching the im2col tap order; biases -> (Cout,1).
    flat_params = []
    for (w, b, dil, pad) in layers:
        KH, KW, cin_l, cout_l = w.shape
        wf = jnp.transpose(w, (3, 0, 1, 2)).reshape(cout_l, KH * KW * cin_l)
        flat_params += [wf.astype(MXU_DTYPE), b.reshape(cout_l, 1)]

    # Fused heads: stack mask_layer and dot_layer into a single (NC1 + C, C) matmul.
    wh = jnp.concatenate([jnp.transpose(p["w_mask"]), jnp.transpose(p["w_dot"])],
                         axis=0).astype(MXU_DTYPE)
    bh = jnp.concatenate([p["b_mask"], p["b_dot"]]).reshape(NC1 + C, 1)

    inputs = [maskf, xp] + flat_params + [wh, bh]

    in_specs = [pl.BlockSpec((1, L), lambda b: (0, 0)),
                pl.BlockSpec((1, Cin, L), lambda b: (b, 0, 0))]
    for a in flat_params + [wh, bh]:
        in_specs.append(pl.BlockSpec(a.shape, lambda b: (0, 0)))

    out_specs = (pl.BlockSpec((1, NC1, L), lambda b: (b, 0, 0)),
                 pl.BlockSpec((1, C, L), lambda b: (b, 0, 0)))
    out_shape = (jax.ShapeDtypeStruct((B, NC1, L), jnp.float32),
                 jax.ShapeDtypeStruct((B, C, L), jnp.float32))

    kernel = functools.partial(fused_mask_ann_kernel,
                               meta=tuple(meta), geom=(Wp, L, marg_al))

    mask_p, out_p = pl.pallas_call(
        kernel,
        out_shape=out_shape,
        grid=(B,),
        in_specs=in_specs,
        out_specs=out_specs,
        scratch_shapes=[pltpu.VMEM((cmax, Lbuf), fw_dtype),
                        pltpu.VMEM((kkc_max, L), col_dtype)],
        compiler_params=pltpu.CompilerParams(dimension_semantics=("parallel",)),
    )(*inputs)

    # Strip alignment tail + padding ring on the host (cheap at demo sizes).
    mask = mask_p[:, :, :Lpad].reshape(B, NC1, Hp, Wp)[:, :, pg:pg + H, pg:pg + W]
    out = out_p[:, :, :Lpad].reshape(B, C, Hp, Wp)[:, :, pg:pg + H, pg:pg + W]
    return mask, out


def mask_denoise_head_forward(xs, params_per_stage):
    Out_Pre, Pred_Mask = [], []
    for i, p in enumerate(params_per_stage):
        pred_mask, out_pre = mask_ann_forward(xs[i], p)
        Out_Pre.append(out_pre)
        Pred_Mask.append(pred_mask)
    return tuple(Pred_Mask), Out_Pre


# ----------------------------------------------------------------------------
# Pure-JAX reference (f32) for correctness check
# ----------------------------------------------------------------------------
def _ref_conv2d(x, w, b, dilation, padding):
    return jax.lax.conv_general_dilated(
        x, w, window_strides=(1, 1),
        padding=((padding, padding), (padding, padding)),
        rhs_dilation=(dilation, dilation),
        dimension_numbers=("NHWC", "HWIO", "NHWC")) + b


def ref_mask_ann(x_nchw, p):
    x = jnp.transpose(x_nchw, (0, 2, 3, 1)).astype(jnp.float32)
    feat = x
    for (w, b, dil, pad) in p["stacked"]:
        feat = _ref_conv2d(feat, w, b, dil, pad)
    C, NC1 = p["w_mask"].shape
    mask = _ref_conv2d(feat, p["w_mask"].reshape(1, 1, C, NC1), p["b_mask"], 1, 0)
    dot = jax.nn.sigmoid(
        _ref_conv2d(feat, p["w_dot"].reshape(1, 1, C, C), p["b_dot"], 1, 0))
    out = dot * x
    return jnp.transpose(mask, (0, 3, 1, 2)), jnp.transpose(out, (0, 3, 1, 2))


# ----------------------------------------------------------------------------
# Deterministic parameter init (synthetic; PyTorch default-like uniform)
# ----------------------------------------------------------------------------
def init_conv(key, cin, cout, k):
    kw, kb = jax.random.split(key)
    limit = 1.0 / np.sqrt(cin * k * k)
    w = jax.random.uniform(kw, (k, k, cin, cout), minval=-limit, maxval=limit,
                           dtype=jnp.float32)
    b = jax.random.uniform(kb, (cout,), minval=-limit, maxval=limit,
                           dtype=jnp.float32)
    return w, b


def init_mask_ann_params(key, num_classes, in_ch, out_ch, stacked_convs,
                         kernel_size, dilation, padding):
    keys = jax.random.split(key, stacked_convs + 3)
    stacked = []
    for i in range(stacked_convs):
        chn = in_ch if i == 0 else out_ch
        w, b = init_conv(keys[i], chn, out_ch, kernel_size[i])
        stacked.append((w, b, dilation[i], padding[i]))
    # final 1x1 conv in the stacked list
    w, b = init_conv(keys[stacked_convs], out_ch, out_ch, 1)
    stacked.append((w, b, 1, 0))
    # mask_layer 1x1: out_ch -> num_classes + 1
    wm, bm = init_conv(keys[stacked_convs + 1], out_ch, num_classes + 1, 1)
    # dot_layer 1x1: out_ch -> out_ch (sigmoid applied in the fused kernel)
    wd, bd = init_conv(keys[stacked_convs + 2], out_ch, out_ch, 1)
    return {
        "stacked": stacked,
        "w_mask": wm.reshape(out_ch, num_classes + 1), "b_mask": bm,
        "w_dot": wd.reshape(out_ch, out_ch), "b_dot": bd,
    }


# ----------------------------------------------------------------------------
if __name__ == "__main__":
    # Small config consistent with MaskDenoiseHead defaults (downscaled).
    num_classes = 3
    stage = 3
    in_channels = (8, 16, 16)
    out_channels = (8, 16, 16)
    stacked_convs = 3
    kernel_size = (3, 3, 3)
    dilation = (2, 2, 2)
    padding = (2, 2, 2)
    batch = 2
    spatial = (16, 8, 8)

    root = jax.random.PRNGKey(0)
    k_params, k_inputs = jax.random.split(root)

    pkeys = jax.random.split(k_params, stage)
    params = [
        init_mask_ann_params(pkeys[i], num_classes, in_channels[i],
                             out_channels[i], stacked_convs,
                             kernel_size, dilation, padding)
        for i in range(stage)
    ]

    # FPN-style multi-scale inputs, NCHW (PyTorch convention).
    ikeys = jax.random.split(k_inputs, stage)
    xs = [
        jax.random.normal(ikeys[i], (batch, in_channels[i], spatial[i], spatial[i]),
                          dtype=jnp.float32)
        for i in range(stage)
    ]

    # Run the Pallas implementation.
    pred_masks, out_pres = mask_denoise_head_forward(xs, params)
    pred_masks = jax.block_until_ready(pred_masks)
    out_pres = jax.block_until_ready(out_pres)

    # Check against the pure-JAX f32 reference (bf16 MXU path -> loosened tolerances).
    for i in range(stage):
        ref_mask, ref_out = ref_mask_ann(xs[i], params[i])
        assert pred_masks[i].shape == (batch, num_classes + 1, spatial[i], spatial[i])
        assert out_pres[i].shape == (batch, in_channels[i], spatial[i], spatial[i])
        np.testing.assert_allclose(np.asarray(pred_masks[i]), np.asarray(ref_mask),
                                   rtol=5e-2, atol=5e-2)
        np.testing.assert_allclose(np.asarray(out_pres[i]), np.asarray(ref_out),
                                   rtol=5e-2, atol=5e-2)

    print("KERNEL_OK")
</pallas_src>

<mosaic_0001>
module attributes {stable_mosaic.version = 11 : i64} {
  func.func @fused_mask_ann_kernel(%arg0: i32, %arg1: memref<1x512xf32, #tpu.memory_space<vmem>>, %arg2: memref<1x8x512xf32, #tpu.memory_space<vmem>>, %arg3: memref<8x72xbf16, #tpu.memory_space<vmem>>, %arg4: memref<8x1xf32, #tpu.memory_space<vmem>>, %arg5: memref<8x72xbf16, #tpu.memory_space<vmem>>, %arg6: memref<8x1xf32, #tpu.memory_space<vmem>>, %arg7: memref<8x72xbf16, #tpu.memory_space<vmem>>, %arg8: memref<8x1xf32, #tpu.memory_space<vmem>>, %arg9: memref<8x8xbf16, #tpu.memory_space<vmem>>, %arg10: memref<8x1xf32, #tpu.memory_space<vmem>>, %arg11: memref<12x8xbf16, #tpu.memory_space<vmem>>, %arg12: memref<12x1xf32, #tpu.memory_space<vmem>>, %arg13: memref<1x4x512xf32, #tpu.memory_space<vmem>>, %arg14: memref<1x8x512xf32, #tpu.memory_space<vmem>>, %arg15: memref<8x768xbf16, #tpu.memory_space<vmem>>, %arg16: memref<72x512xf32, #tpu.memory_space<vmem>>) attributes {dimension_semantics = [#tpu.dimension_semantics<parallel>], iteration_bounds = array<i64: 2>, scalar_prefetch = 0 : i64, scratch_operands = 2 : i64, tpu.core_type = #tpu.core_type<tc>, window_params = [{pipeline_mode = #tpu.pipeline_mode<synchronous>, transform_indices = @transform_0, window_bounds = array<i64: 1, 512>}, {transform_indices = @transform_1, window_bounds = array<i64: 1, 8, 512>}, {pipeline_mode = #tpu.pipeline_mode<synchronous>, transform_indices = @transform_2, window_bounds = array<i64: 8, 72>}, {pipeline_mode = #tpu.pipeline_mode<synchronous>, transform_indices = @transform_3, window_bounds = array<i64: 8, 1>}, {pipeline_mode = #tpu.pipeline_mode<synchronous>, transform_indices = @transform_4, window_bounds = array<i64: 8, 72>}, {pipeline_mode = #tpu.pipeline_mode<synchronous>, transform_indices = @transform_5, window_bounds = array<i64: 8, 1>}, {pipeline_mode = #tpu.pipeline_mode<synchronous>, transform_indices = @transform_6, window_bounds = array<i64: 8, 72>}, {pipeline_mode = #tpu.pipeline_mode<synchronous>, transform_indices = @transform_7, window_bounds = array<i64: 8, 1>}, {pipeline_mode = #tpu.pipeline_mode<synchronous>, transform_indices = @transform_8, window_bounds = array<i64: 8, 8>}, {pipeline_mode = #tpu.pipeline_mode<synchronous>, transform_indices = @transform_9, window_bounds = array<i64: 8, 1>}, {pipeline_mode = #tpu.pipeline_mode<synchronous>, transform_indices = @transform_10, window_bounds = array<i64: 12, 8>}, {pipeline_mode = #tpu.pipeline_mode<synchronous>, transform_indices = @transform_11, window_bounds = array<i64: 12, 1>}, {transform_indices = @transform_12, window_bounds = array<i64: 1, 4, 512>}, {transform_indices = @transform_13, window_bounds = array<i64: 1, 8, 512>}]} {
    %cst = arith.constant 0.000000e+00 : bf16
    %0 = vector.broadcast %cst : bf16 to vector<8x128xbf16>
    %c0 = arith.constant 0 : index
    %c0_0 = arith.constant 0 : index
    %1 = vector.load %arg15[%c0, %c0_0] : memref<8x768xbf16, #tpu.memory_space<vmem>>, vector<8x128xbf16>
    tpu.vector_store %arg15[%c0, %c0_0], %0 {strides = array<i32>} : memref<8x768xbf16, #tpu.memory_space<vmem>>, vector<8x128xbf16>,
    %cst_1 = arith.constant 0.000000e+00 : bf16
    %2 = vector.broadcast %cst_1 : bf16 to vector<8x128xbf16>
    %c0_2 = arith.constant 0 : index
    %c640 = arith.constant 640 : index
    %3 = vector.load %arg15[%c0_2, %c640] : memref<8x768xbf16, #tpu.memory_space<vmem>>, vector<8x128xbf16>
    tpu.vector_store %arg15[%c0_2, %c640], %2 {strides = array<i32>} : memref<8x768xbf16, #tpu.memory_space<vmem>>, vector<8x128xbf16>,
    %c0_3 = arith.constant 0 : index
    %c0_4 = arith.constant 0 : index
    %4 = vector.load %arg1[%c0_3, %c0_4] : memref<1x512xf32, #tpu.memory_space<vmem>>, vector<1x512xf32>
    %5 = vector.shape_cast %4 : vector<1x512xf32> to vector<1x512xf32>
    %6 = vector.broadcast %5 : vector<1x512xf32> to vector<8x512xf32>
    %c0_5 = arith.constant 0 : index
    %c0_6 = arith.constant 0 : index
    %c0_7 = arith.constant 0 : index
    %7 = vector.load %arg2[%c0_5, %c0_6, %c0_7] : memref<1x8x512xf32, #tpu.memory_space<vmem>>, vector<1x8x512xf32>
    %8 = vector.shape_cast %7 : vector<1x8x512xf32> to vector<8x512xf32>
    %9 = arith.truncf %8 : vector<8x512xf32> to vector<8x512xbf16>
    %c0_8 = arith.constant 0 : index
    %c128 = arith.constant 128 : index
    %10 = vector.load %arg15[%c0_8, %c128] : memref<8x768xbf16, #tpu.memory_space<vmem>>, vector<8x512xbf16>
    tpu.vector_store %arg15[%c0_8, %c128], %9 {strides = array<i32>} : memref<8x768xbf16, #tpu.memory_space<vmem>>, vector<8x512xbf16>,
    %c0_9 = arith.constant 0 : index
    %c86 = arith.constant 86 : index
    %11 = vector.load %arg15[%c0_9, %c86] : memref<8x768xbf16, #tpu.memory_space<vmem>>, vector<8x512xbf16>
    %12 = arith.extf %11 : vector<8x512xbf16> to vector<8x512xf32>
    %c0_10 = arith.constant 0 : index
    %c0_11 = arith.constant 0 : index
    %13 = vector.load %arg16[%c0_10, %c0_11] : memref<72x512xf32, #tpu.memory_space<vmem>>, vector<8x512xf32>
    tpu.vector_store %arg16[%c0_10, %c0_11], %12 {strides = array<i32>} : memref<72x512xf32, #tpu.memory_space<vmem>>, vector<8x512xf32>,
    %c0_12 = arith.constant 0 : index
    %c88 = arith.constant 88 : index
    %14 = vector.load %arg15[%c0_12, %c88] : memref<8x768xbf16, #tpu.memory_space<vmem>>, vector<8x512xbf16>
    %15 = arith.extf %14 : vector<8x512xbf16> to vector<8x512xf32>
    %c8 = arith.constant 8 : index
    %c0_13 = arith.constant 0 : index
    %16 = vector.load %arg16[%c8, %c0_13] : memref<72x512xf32, #tpu.memory_space<vmem>>, vector<8x512xf32>
    tpu.vector_store %arg16[%c8, %c0_13], %15 {strides = array<i32>} : memref<72x512xf32, #tpu.memory_space<vmem>>, vector<8x512xf32>,
    %c0_14 = arith.constant 0 : index
    %c90 = arith.constant 90 : index
    %17 = vector.load %arg15[%c0_14, %c90] : memref<8x768xbf16, #tpu.memory_space<vmem>>, vector<8x512xbf16>
    %18 = arith.extf %17 : vector<8x512xbf16> to vector<8x512xf32>
    %c16 = arith.constant 16 : index
    %c0_15 = arith.constant 0 : index
    %19 = vector.load %arg16[%c16, %c0_15] : memref<72x512xf32, #tpu.memory_space<vmem>>, vector<8x512xf32>
    tpu.vector_store %arg16[%c16, %c0_15], %18 {strides = array<i32>} : memref<72x512xf32, #tpu.memory_space<vmem>>, vector<8x512xf32>,
    %c0_16 = arith.constant 0 : index
    %c126 = arith.constant 126 : index
    %20 = vector.load %arg15[%c0_16, %c126] : memref<8x768xbf16, #tpu.memory_space<vmem>>, vector<8x512xbf16>
    %21 = arith.extf %20 : vector<8x512xbf16> to vector<8x512xf32>
    %c24 = arith.constant 24 : index
    %c0_17 = arith.constant 0 : index
    %22 = vector.load %arg16[%c24, %c0_17] : memref<72x512xf32, #tpu.memory_space<vmem>>, vector<8x512xf32>
    tpu.vector_store %arg16[%c24, %c0_17], %21 {strides = array<i32>} : memref<72x512xf32, #tpu.memory_space<vmem>>, vector<8x512xf32>,
    %c0_18 = arith.constant 0 : index
    %c128_19 = arith.constant 128 : index
    %23 = vector.load %arg15[%c0_18, %c128_19] : memref<8x768xbf16, #tpu.memory_space<vmem>>, vector<8x512xbf16>
    %24 = arith.extf %23 : vector<8x512xbf16> to vector<8x512xf32>
    %c32 = arith.constant 32 : index
    %c0_20 = arith.constant 0 : index
    %25 = vector.load %arg16[%c32, %c0_20] : memref<72x512xf32, #tpu.memory_space<vmem>>, vector<8x512xf32>
    tpu.vector_store %arg16[%c32, %c0_20], %24 {strides = array<i32>} : memref<72x512xf32, #tpu.memory_space<vmem>>, vector<8x512xf32>,
    %c0_21 = arith.constant 0 : index
    %c130 = arith.constant 130 : index
    %26 = vector.load %arg15[%c0_21, %c130] : memref<8x768xbf16, #tpu.memory_space<vmem>>, vector<8x512xbf16>
    %27 = arith.extf %26 : vector<8x512xbf16> to vector<8x512xf32>
    %c40 = arith.constant 40 : index
    %c0_22 = arith.constant 0 : index
    %28 = vector.load %arg16[%c40, %c0_22] : memref<72x512xf32, #tpu.memory_space<vmem>>, vector<8x512xf32>
    tpu.vector_store %arg16[%c40, %c0_22], %27 {strides = array<i32>} : memref<72x512xf32, #tpu.memory_space<vmem>>, vector<8x512xf32>,
    %c0_23 = arith.constant 0 : index
    %c166 = arith.constant 166 : index
    %29 = vector.load %arg15[%c0_23, %c166] : memref<8x768xbf16, #tpu.memory_space<vmem>>, vector<8x512xbf16>
    %30 = arith.extf %29 : vector<8x512xbf16> to vector<8x512xf32>
    %c48 = arith.constant 48 : index
    %c0_24 = arith.constant 0 : index
    %31 = vector.load %arg16[%c48, %c0_24] : memref<72x512xf32, #tpu.memory_space<vmem>>, vector<8x512xf32>
    tpu.vector_store %arg16[%c48, %c0_24], %30 {strides = array<i32>} : memref<72x512xf32, #tpu.memory_space<vmem>>, vector<8x512xf32>,
    %c0_25 = arith.constant 0 : index
    %c168 = arith.constant 168 : index
    %32 = vector.load %arg15[%c0_25, %c168] : memref<8x768xbf16, #tpu.memory_space<vmem>>, vector<8x512xbf16>
    %33 = arith.extf %32 : vector<8x512xbf16> to vector<8x512xf32>
    %c56 = arith.constant 56 : index
    %c0_26 = arith.constant 0 : index
    %34 = vector.load %arg16[%c56, %c0_26] : memref<72x512xf32, #tpu.memory_space<vmem>>, vector<8x512xf32>
    tpu.vector_store %arg16[%c56, %c0_26], %33 {strides = array<i32>} : memref<72x512xf32, #tpu.memory_space<vmem>>, vector<8x512xf32>,
    %c0_27 = arith.constant 0 : index
    %c170 = arith.constant 170 : index
    %35 = vector.load %arg15[%c0_27, %c170] : memref<8x768xbf16, #tpu.memory_space<vmem>>, vector<8x512xbf16>
    %36 = arith.extf %35 : vector<8x512xbf16> to vector<8x512xf32>
    %c64 = arith.constant 64 : index
    %c0_28 = arith.constant 0 : index
    %37 = vector.load %arg16[%c64, %c0_28] : memref<72x512xf32, #tpu.memory_space<vmem>>, vector<8x512xf32>
    tpu.vector_store %arg16[%c64, %c0_28], %36 {strides = array<i32>} : memref<72x512xf32, #tpu.memory_space<vmem>>, vector<8x512xf32>,
    %c0_29 = arith.constant 0 : index
    %c0_30 = arith.constant 0 : index
    %38 = vector.load %arg16[%c0_29, %c0_30] : memref<72x512xf32, #tpu.memory_space<vmem>>, vector<72x512xf32>
    %39 = arith.truncf %38 : vector<72x512xf32> to vector<72x512xbf16>
    %c0_31 = arith.constant 0 : index
    %c0_32 = arith.constant 0 : index
    %40 = vector.load %arg3[%c0_31, %c0_32] : memref<8x72xbf16, #tpu.memory_space<vmem>>, vector<8x72xbf16>
    %cst_33 = arith.constant dense<0.000000e+00> : vector<8x512xf32>
    %41 = tpu.matmul %40, %39, %cst_33 {dimension_numbers = #tpu.dot_dimension_numbers<[1], [0], [0], [1], [0, 0, 1, 1], [], []>} : vector<8x72xbf16>, vector<72x512xbf16>, vector<8x512xf32> -> vector<8x512xf32>
    %c0_34 = arith.constant 0 : index
    %c0_35 = arith.constant 0 : index
    %42 = vector.load %arg4[%c0_34, %c0_35] : memref<8x1xf32, #tpu.memory_space<vmem>>, vector<8x1xf32>
    %43 = vector.broadcast %42 : vector<8x1xf32> to vector<8x512xf32>
    %44 = arith.addf %41, %43 : vector<8x512xf32>
    %45 = arith.mulf %44, %6 : vector<8x512xf32>
    %46 = arith.truncf %45 : vector<8x512xf32> to vector<8x512xbf16>
    %c0_36 = arith.constant 0 : index
    %c128_37 = arith.constant 128 : index
    %47 = vector.load %arg15[%c0_36, %c128_37] : memref<8x768xbf16, #tpu.memory_space<vmem>>, vector<8x512xbf16>
    tpu.vector_store %arg15[%c0_36, %c128_37], %46 {strides = array<i32>} : memref<8x768xbf16, #tpu.memory_space<vmem>>, vector<8x512xbf16>,
    %c0_38 = arith.constant 0 : index
    %c86_39 = arith.constant 86 : index
    %48 = vector.load %arg15[%c0_38, %c86_39] : memref<8x768xbf16, #tpu.memory_space<vmem>>, vector<8x512xbf16>
    %49 = arith.extf %48 : vector<8x512xbf16> to vector<8x512xf32>
    %c0_40 = arith.constant 0 : index
    %c0_41 = arith.constant 0 : index
    %50 = vector.load %arg16[%c0_40, %c0_41] : memref<72x512xf32, #tpu.memory_space<vmem>>, vector<8x512xf32>
    tpu.vector_store %arg16[%c0_40, %c0_41], %49 {strides = array<i32>} : memref<72x512xf32, #tpu.memory_space<vmem>>, vector<8x512xf32>,
    %c0_42 = arith.constant 0 : index
    %c88_43 = arith.constant 88 : index
    %51 = vector.load %arg15[%c0_42, %c88_43] : memref<8x768xbf16, #tpu.memory_space<vmem>>, vector<8x512xbf16>
    %52 = arith.extf %51 : vector<8x512xbf16> to vector<8x512xf32>
    %c8_44 = arith.constant 8 : index
    %c0_45 = arith.constant 0 : index
    %53 = vector.load %arg16[%c8_44, %c0_45] : memref<72x512xf32, #tpu.memory_space<vmem>>, vector<8x512xf32>
    tpu.vector_store %arg16[%c8_44, %c0_45], %52 {strides = array<i32>} : memref<72x512xf32, #tpu.memory_space<vmem>>, vector<8x512xf32>,
    %c0_46 = arith.constant 0 : index
    %c90_47 = arith.constant 90 : index
    %54 = vector.load %arg15[%c0_46, %c90_47] : memref<8x768xbf16, #tpu.memory_space<vmem>>, vector<8x512xbf16>
    %55 = arith.extf %54 : vector<8x512xbf16> to vector<8x512xf32>
    %c16_48 = arith.constant 16 : index
    %c0_49 = arith.constant 0 : index
    %56 = vector.load %arg16[%c16_48, %c0_49] : memref<72x512xf32, #tpu.memory_space<vmem>>, vector<8x512xf32>
    tpu.vector_store %arg16[%c16_48, %c0_49], %55 {strides = array<i32>} : memref<72x512xf32, #tpu.memory_space<vmem>>, vector<8x512xf32>,
    %c0_50 = arith.constant 0 : index
    %c126_51 = arith.constant 126 : index
    %57 = vector.load %arg15[%c0_50, %c126_51] : memref<8x768xbf16, #tpu.memory_space<vmem>>, vector<8x512xbf16>
    %58 = arith.extf %57 : vector<8x512xbf16> to vector<8x512xf32>
    %c24_52 = arith.constant 24 : index
    %c0_53 = arith.constant 0 : index
    %59 = vector.load %arg16[%c24_52, %c0_53] : memref<72x512xf32, #tpu.memory_space<vmem>>, vector<8x512xf32>
    tpu.vector_store %arg16[%c24_52, %c0_53], %58 {strides = array<i32>} : memref<72x512xf32, #tpu.memory_space<vmem>>, vector<8x512xf32>,
    %c0_54 = arith.constant 0 : index
    %c128_55 = arith.constant 128 : index
    %60 = vector.load %arg15[%c0_54, %c128_55] : memref<8x768xbf16, #tpu.memory_space<vmem>>, vector<8x512xbf16>
    %61 = arith.extf %60 : vector<8x512xbf16> to vector<8x512xf32>
    %c32_56 = arith.constant 32 : index
    %c0_57 = arith.constant 0 : index
    %62 = vector.load %arg16[%c32_56, %c0_57] : memref<72x512xf32, #tpu.memory_space<vmem>>, vector<8x512xf32>
    tpu.vector_store %arg16[%c32_56, %c0_57], %61 {strides = array<i32>} : memref<72x512xf32, #tpu.memory_space<vmem>>, vector<8x512xf32>,
    %c0_58 = arith.constant 0 : index
    %c130_59 = arith.constant 130 : index
    %63 = vector.load %arg15[%c0_58, %c130_59] : memref<8x768xbf16, #tpu.memory_space<vmem>>, vector<8x512xbf16>
    %64 = arith.extf %63 : vector<8x512xbf16> to vector<8x512xf32>
    %c40_60 = arith.constant 40 : index
    %c0_61 = arith.constant 0 : index
    %65 = vector.load %arg16[%c40_60, %c0_61] : memref<72x512xf32, #tpu.memory_space<vmem>>, vector<8x512xf32>
    tpu.vector_store %arg16[%c40_60, %c0_61], %64 {strides = array<i32>} : memref<72x512xf32, #tpu.memory_space<vmem>>, vector<8x512xf32>,
    %c0_62 = arith.constant 0 : index
    %c166_63 = arith.constant 166 : index
    %66 = vector.load %arg15[%c0_62, %c166_63] : memref<8x768xbf16, #tpu.memory_space<vmem>>, vector<8x512xbf16>
    %67 = arith.extf %66 : vector<8x512xbf16> to vector<8x512xf32>
    %c48_64 = arith.constant 48 : index
    %c0_65 = arith.constant 0 : index
    %68 = vector.load %arg16[%c48_64, %c0_65] : memref<72x512xf32, #tpu.memory_space<vmem>>, vector<8x512xf32>
    tpu.vector_store %arg16[%c48_64, %c0_65], %67 {strides = array<i32>} : memref<72x512xf32, #tpu.memory_space<vmem>>, vector<8x512xf32>,
    %c0_66 = arith.constant 0 : index
    %c168_67 = arith.constant 168 : index
    %69 = vector.load %arg15[%c0_66, %c168_67] : memref<8x768xbf16, #tpu.memory_space<vmem>>, vector<8x512xbf16>
    %70 = arith.extf %69 : vector<8x512xbf16> to vector<8x512xf32>
    %c56_68 = arith.constant 56 : index
    %c0_69 = arith.constant 0 : index
    %71 = vector.load %arg16[%c56_68, %c0_69] : memref<72x512xf32, #tpu.memory_space<vmem>>, vector<8x512xf32>
    tpu.vector_store %arg16[%c56_68, %c0_69], %70 {strides = array<i32>} : memref<72x512xf32, #tpu.memory_space<vmem>>, vector<8x512xf32>,
    %c0_70 = arith.constant 0 : index
    %c170_71 = arith.constant 170 : index
    %72 = vector.load %arg15[%c0_70, %c170_71] : memref<8x768xbf16, #tpu.memory_space<vmem>>, vector<8x512xbf16>
    %73 = arith.extf %72 : vector<8x512xbf16> to vector<8x512xf32>
    %c64_72 = arith.constant 64 : index
    %c0_73 = arith.constant 0 : index
    %74 = vector.load %arg16[%c64_72, %c0_73] : memref<72x512xf32, #tpu.memory_space<vmem>>, vector<8x512xf32>
    tpu.vector_store %arg16[%c64_72, %c0_73], %73 {strides = array<i32>} : memref<72x512xf32, #tpu.memory_space<vmem>>, vector<8x512xf32>,
    %c0_74 = arith.constant 0 : index
    %c0_75 = arith.constant 0 : index
    %75 = vector.load %arg16[%c0_74, %c0_75] : memref<72x512xf32, #tpu.memory_space<vmem>>, vector<72x512xf32>
    %76 = arith.truncf %75 : vector<72x512xf32> to vector<72x512xbf16>
    %c0_76 = arith.constant 0 : index
    %c0_77 = arith.constant 0 : index
    %77 = vector.load %arg5[%c0_76, %c0_77] : memref<8x72xbf16, #tpu.memory_space<vmem>>, vector<8x72xbf16>
    %cst_78 = arith.constant dense<0.000000e+00> : vector<8x512xf32>
    %78 = tpu.matmul %77, %76, %cst_78 {dimension_numbers = #tpu.dot_dimension_numbers<[1], [0], [0], [1], [0, 0, 1, 1], [], []>} : vector<8x72xbf16>, vector<72x512xbf16>, vector<8x512xf32> -> vector<8x512xf32>
    %c0_79 = arith.constant 0 : index
    %c0_80 = arith.constant 0 : index
    %79 = vector.load %arg6[%c0_79, %c0_80] : memref<8x1xf32, #tpu.memory_space<vmem>>, vector<8x1xf32>
    %80 = vector.broadcast %79 : vector<8x1xf32> to vector<8x512xf32>
    %81 = arith.addf %78, %80 : vector<8x512xf32>
    %82 = arith.mulf %81, %6 : vector<8x512xf32>
    %83 = arith.truncf %82 : vector<8x512xf32> to vector<8x512xbf16>
    %c0_81 = arith.constant 0 : index
    %c128_82 = arith.constant 128 : index
    %84 = vector.load %arg15[%c0_81, %c128_82] : memref<8x768xbf16, #tpu.memory_space<vmem>>, vector<8x512xbf16>
    tpu.vector_store %arg15[%c0_81, %c128_82], %83 {strides = array<i32>} : memref<8x768xbf16, #tpu.memory_space<vmem>>, vector<8x512xbf16>,
    %c0_83 = arith.constant 0 : index
    %c86_84 = arith.constant 86 : index
    %85 = vector.load %arg15[%c0_83, %c86_84] : memref<8x768xbf16, #tpu.memory_space<vmem>>, vector<8x512xbf16>
    %86 = arith.extf %85 : vector<8x512xbf16> to vector<8x512xf32>
    %c0_85 = arith.constant 0 : index
    %c0_86 = arith.constant 0 : index
    %87 = vector.load %arg16[%c0_85, %c0_86] : memref<72x512xf32, #tpu.memory_space<vmem>>, vector<8x512xf32>
    tpu.vector_store %arg16[%c0_85, %c0_86], %86 {strides = array<i32>} : memref<72x512xf32, #tpu.memory_space<vmem>>, vector<8x512xf32>,
    %c0_87 = arith.constant 0 : index
    %c88_88 = arith.constant 88 : index
    %88 = vector.load %arg15[%c0_87, %c88_88] : memref<8x768xbf16, #tpu.memory_space<vmem>>, vector<8x512xbf16>
    %89 = arith.extf %88 : vector<8x512xbf16> to vector<8x512xf32>
    %c8_89 = arith.constant 8 : index
    %c0_90 = arith.constant 0 : index
    %90 = vector.load %arg16[%c8_89, %c0_90] : memref<72x512xf32, #tpu.memory_space<vmem>>, vector<8x512xf32>
    tpu.vector_store %arg16[%c8_89, %c0_90], %89 {strides = array<i32>} : memref<72x512xf32, #tpu.memory_space<vmem>>, vector<8x512xf32>,
    %c0_91 = arith.constant 0 : index
    %c90_92 = arith.constant 90 : index
    %91 = vector.load %arg15[%c0_91, %c90_92] : memref<8x768xbf16, #tpu.memory_space<vmem>>, vector<8x512xbf16>
    %92 = arith.extf %91 : vector<8x512xbf16> to vector<8x512xf32>
    %c16_93 = arith.constant 16 : index
    %c0_94 = arith.constant 0 : index
    %93 = vector.load %arg16[%c16_93, %c0_94] : memref<72x512xf32, #tpu.memory_space<vmem>>, vector<8x512xf32>
    tpu.vector_store %arg16[%c16_93, %c0_94], %92 {strides = array<i32>} : memref<72x512xf32, #tpu.memory_space<vmem>>, vector<8x512xf32>,
    %c0_95 = arith.constant 0 : index
    %c126_96 = arith.constant 126 : index
    %94 = vector.load %arg15[%c0_95, %c126_96] : memref<8x768xbf16, #tpu.memory_space<vmem>>, vector<8x512xbf16>
    %95 = arith.extf %94 : vector<8x512xbf16> to vector<8x512xf32>
    %c24_97 = arith.constant 24 : index
    %c0_98 = arith.constant 0 : index
    %96 = vector.load %arg16[%c24_97, %c0_98] : memref<72x512xf32, #tpu.memory_space<vmem>>, vector<8x512xf32>
    tpu.vector_store %arg16[%c24_97, %c0_98], %95 {strides = array<i32>} : memref<72x512xf32, #tpu.memory_space<vmem>>, vector<8x512xf32>,
    %c0_99 = arith.constant 0 : index
    %c128_100 = arith.constant 128 : index
    %97 = vector.load %arg15[%c0_99, %c128_100] : memref<8x768xbf16, #tpu.memory_space<vmem>>, vector<8x512xbf16>
    %98 = arith.extf %97 : vector<8x512xbf16> to vector<8x512xf32>
    %c32_101 = arith.constant 32 : index
    %c0_102 = arith.constant 0 : index
    %99 = vector.load %arg16[%c32_101, %c0_102] : memref<72x512xf32, #tpu.memory_space<vmem>>, vector<8x512xf32>
    tpu.vector_store %arg16[%c32_101, %c0_102], %98 {strides = array<i32>} : memref<72x512xf32, #tpu.memory_space<vmem>>, vector<8x512xf32>,
    %c0_103 = arith.constant 0 : index
    %c130_104 = arith.constant 130 : index
    %100 = vector.load %arg15[%c0_103, %c130_104] : memref<8x768xbf16, #tpu.memory_space<vmem>>, vector<8x512xbf16>
    %101 = arith.extf %100 : vector<8x512xbf16> to vector<8x512xf32>
    %c40_105 = arith.constant 40 : index
    %c0_106 = arith.constant 0 : index
    %102 = vector.load %arg16[%c40_105, %c0_106] : memref<72x512xf32, #tpu.memory_space<vmem>>, vector<8x512xf32>
    tpu.vector_store %arg16[%c40_105, %c0_106], %101 {strides = array<i32>} : memref<72x512xf32, #tpu.memory_space<vmem>>, vector<8x512xf32>,
    %c0_107 = arith.constant 0 : index
    %c166_108 = arith.constant 166 : index
    %103 = vector.load %arg15[%c0_107, %c166_108] : memref<8x768xbf16, #tpu.memory_space<vmem>>, vector<8x512xbf16>
    %104 = arith.extf %103 : vector<8x512xbf16> to vector<8x512xf32>
    %c48_109 = arith.constant 48 : index
    %c0_110 = arith.constant 0 : index
    %105 = vector.load %arg16[%c48_109, %c0_110] : memref<72x512xf32, #tpu.memory_space<vmem>>, vector<8x512xf32>
    tpu.vector_store %arg16[%c48_109, %c0_110], %104 {strides = array<i32>} : memref<72x512xf32, #tpu.memory_space<vmem>>, vector<8x512xf32>,
    %c0_111 = arith.constant 0 : index
    %c168_112 = arith.constant 168 : index
    %106 = vector.load %arg15[%c0_111, %c168_112] : memref<8x768xbf16, #tpu.memory_space<vmem>>, vector<8x512xbf16>
    %107 = arith.extf %106 : vector<8x512xbf16> to vector<8x512xf32>
    %c56_113 = arith.constant 56 : index
    %c0_114 = arith.constant 0 : index
    %108 = vector.load %arg16[%c56_113, %c0_114] : memref<72x512xf32, #tpu.memory_space<vmem>>, vector<8x512xf32>
    tpu.vector_store %arg16[%c56_113, %c0_114], %107 {strides = array<i32>} : memref<72x512xf32, #tpu.memory_space<vmem>>, vector<8x512xf32>,
    %c0_115 = arith.constant 0 : index
    %c170_116 = arith.constant 170 : index
    %109 = vector.load %arg15[%c0_115, %c170_116] : memref<8x768xbf16, #tpu.memory_space<vmem>>, vector<8x512xbf16>
    %110 = arith.extf %109 : vector<8x512xbf16> to vector<8x512xf32>
    %c64_117 = arith.constant 64 : index
    %c0_118 = arith.constant 0 : index
    %111 = vector.load %arg16[%c64_117, %c0_118] : memref<72x512xf32, #tpu.memory_space<vmem>>, vector<8x512xf32>
    tpu.vector_store %arg16[%c64_117, %c0_118], %110 {strides = array<i32>} : memref<72x512xf32, #tpu.memory_space<vmem>>, vector<8x512xf32>,
    %c0_119 = arith.constant 0 : index
    %c0_120 = arith.constant 0 : index
    %112 = vector.load %arg16[%c0_119, %c0_120] : memref<72x512xf32, #tpu.memory_space<vmem>>, vector<72x512xf32>
    %113 = arith.truncf %112 : vector<72x512xf32> to vector<72x512xbf16>
    %c0_121 = arith.constant 0 : index
    %c0_122 = arith.constant 0 : index
    %114 = vector.load %arg7[%c0_121, %c0_122] : memref<8x72xbf16, #tpu.memory_space<vmem>>, vector<8x72xbf16>
    %cst_123 = arith.constant dense<0.000000e+00> : vector<8x512xf32>
    %115 = tpu.matmul %114, %113, %cst_123 {dimension_numbers = #tpu.dot_dimension_numbers<[1], [0], [0], [1], [0, 0, 1, 1], [], []>} : vector<8x72xbf16>, vector<72x512xbf16>, vector<8x512xf32> -> vector<8x512xf32>
    %c0_124 = arith.constant 0 : index
    %c0_125 = arith.constant 0 : index
    %116 = vector.load %arg8[%c0_124, %c0_125] : memref<8x1xf32, #tpu.memory_space<vmem>>, vector<8x1xf32>
    %117 = vector.broadcast %116 : vector<8x1xf32> to vector<8x512xf32>
    %118 = arith.addf %115, %117 : vector<8x512xf32>
    %119 = arith.mulf %118, %6 : vector<8x512xf32>
    %120 = arith.truncf %119 : vector<8x512xf32> to vector<8x512xbf16>
    %c0_126 = arith.constant 0 : index
    %c0_127 = arith.constant 0 : index
    %121 = vector.load %arg9[%c0_126, %c0_127] : memref<8x8xbf16, #tpu.memory_space<vmem>>, vector<8x8xbf16>
    %cst_128 = arith.constant dense<0.000000e+00> : vector<8x512xf32>
    %122 = tpu.matmul %121, %120, %cst_128 {dimension_numbers = #tpu.dot_dimension_numbers<[1], [0], [0], [1], [0, 0, 1, 1], [], []>} : vector<8x8xbf16>, vector<8x512xbf16>, vector<8x512xf32> -> vector<8x512xf32>
    %c0_129 = arith.constant 0 : index
    %c0_130 = arith.constant 0 : index
    %123 = vector.load %arg10[%c0_129, %c0_130] : memref<8x1xf32, #tpu.memory_space<vmem>>, vector<8x1xf32>
    %124 = vector.broadcast %123 : vector<8x1xf32> to vector<8x512xf32>
    %125 = arith.addf %122, %124 : vector<8x512xf32>
    %126 = arith.mulf %125, %6 : vector<8x512xf32>
    %c0_131 = arith.constant 0 : index
    %c0_132 = arith.constant 0 : index
    %127 = vector.load %arg11[%c0_131, %c0_132] : memref<12x8xbf16, #tpu.memory_space<vmem>>, vector<12x8xbf16>
    %128 = arith.truncf %126 : vector<8x512xf32> to vector<8x512xbf16>
    %cst_133 = arith.constant dense<0.000000e+00> : vector<12x512xf32>
    %129 = tpu.matmul %127, %128, %cst_133 {dimension_numbers = #tpu.dot_dimension_numbers<[1], [0], [0], [1], [0, 0, 1, 1], [], []>} : vector<12x8xbf16>, vector<8x512xbf16>, vector<12x512xf32> -> vector<12x512xf32>
    %c0_134 = arith.constant 0 : index
    %c0_135 = arith.constant 0 : index
    %130 = vector.load %arg12[%c0_134, %c0_135] : memref<12x1xf32, #tpu.memory_space<vmem>>, vector<12x1xf32>
    %131 = vector.broadcast %130 : vector<12x1xf32> to vector<12x512xf32>
    %132 = arith.addf %129, %131 : vector<12x512xf32>
    %133 = vector.extract_strided_slice %132 {offsets = [0, 0], sizes = [4, 512], strides = [1, 1]} : vector<12x512xf32> to vector<4x512xf32>
    %c0_136 = arith.constant 0 : index
    %c0_137 = arith.constant 0 : index
    %c0_138 = arith.constant 0 : index
    %134 = vector.load %arg13[%c0_136, %c0_137, %c0_138] : memref<1x4x512xf32, #tpu.memory_space<vmem>>, vector<1x4x512xf32>
    %135 = vector.shape_cast %134 : vector<1x4x512xf32> to vector<4x512xf32>
    %136 = vector.shape_cast %133 : vector<4x512xf32> to vector<1x4x512xf32>
    tpu.vector_store %arg13[%c0_136, %c0_137, %c0_138], %136 {strides = array<i32>} : memref<1x4x512xf32, #tpu.memory_space<vmem>>, vector<1x4x512xf32>,
    %137 = vector.extract_strided_slice %132 {offsets = [4, 0], sizes = [8, 512], strides = [1, 1]} : vector<12x512xf32> to vector<8x512xf32>
    %138 = arith.negf %137 : vector<8x512xf32>
    %139 = math.exp %138 : vector<8x512xf32>
    %cst_139 = arith.constant 1.000000e+00 : f32
    %140 = vector.broadcast %cst_139 : f32 to vector<8x512xf32>
    %141 = arith.addf %140, %139 : vector<8x512xf32>
    %142 = arith.divf %140, %141 : vector<8x512xf32>
    %c0_140 = arith.constant 0 : index
    %c0_141 = arith.constant 0 : index
    %c0_142 = arith.constant 0 : index
    %143 = vector.load %arg2[%c0_140, %c0_141, %c0_142] : memref<1x8x512xf32, #tpu.memory_space<vmem>>, vector<1x8x512xf32>
    %144 = vector.shape_cast %143 : vector<1x8x512xf32> to vector<8x512xf32>
    %145 = arith.mulf %142, %144 : vector<8x512xf32>
    %c0_143 = arith.constant 0 : index
    %c0_144 = arith.constant 0 : index
    %c0_145 = arith.constant 0 : index
    %146 = vector.load %arg14[%c0_143, %c0_144, %c0_145] : memref<1x8x512xf32, #tpu.memory_space<vmem>>, vector<1x8x512xf32>
    %147 = vector.shape_cast %146 : vector<1x8x512xf32> to vector<8x512xf32>
    %148 = vector.shape_cast %145 : vector<8x512xf32> to vector<1x8x512xf32>
    tpu.vector_store %arg14[%c0_143, %c0_144, %c0_145], %148 {strides = array<i32>} : memref<1x8x512xf32, #tpu.memory_space<vmem>>, vector<1x8x512xf32>,
    return
  }
  func.func @transform_0(%arg0: i32) -> (i32, i32) {
    %c0_i32 = arith.constant 0 : i32
    %c0_i32_0 = arith.constant 0 : i32
    %c0_i32_1 = arith.constant 0 : i32
    return %c0_i32, %c0_i32_0 : i32, i32
  }
  func.func @transform_1(%arg0: i32) -> (i32, i32, i32) {
    %c0_i32 = arith.constant 0 : i32
    %c0_i32_0 = arith.constant 0 : i32
    %c0_i32_1 = arith.constant 0 : i32
    return %arg0, %c0_i32, %c0_i32_0 : i32, i32, i32
  }
  func.func @transform_2(%arg0: i32) -> (i32, i32) {
    %c0_i32 = arith.constant 0 : i32
    %c0_i32_0 = arith.constant 0 : i32
    %c0_i32_1 = arith.constant 0 : i32
    return %c0_i32, %c0_i32_0 : i32, i32
  }
  func.func @transform_3(%arg0: i32) -> (i32, i32) {
    %c0_i32 = arith.constant 0 : i32
    %c0_i32_0 = arith.constant 0 : i32
    %c0_i32_1 = arith.constant 0 : i32
    return %c0_i32, %c0_i32_0 : i32, i32
  }
  func.func @transform_4(%arg0: i32) -> (i32, i32) {
    %c0_i32 = arith.constant 0 : i32
    %c0_i32_0 = arith.constant 0 : i32
    %c0_i32_1 = arith.constant 0 : i32
    return %c0_i32, %c0_i32_0 : i32, i32
  }
  func.func @transform_5(%arg0: i32) -> (i32, i32) {
    %c0_i32 = arith.constant 0 : i32
    %c0_i32_0 = arith.constant 0 : i32
    %c0_i32_1 = arith.constant 0 : i32
    return %c0_i32, %c0_i32_0 : i32, i32
  }
  func.func @transform_6(%arg0: i32) -> (i32, i32) {
    %c0_i32 = arith.constant 0 : i32
    %c0_i32_0 = arith.constant 0 : i32
    %c0_i32_1 = arith.constant 0 : i32
    return %c0_i32, %c0_i32_0 : i32, i32
  }
  func.func @transform_7(%arg0: i32) -> (i32, i32) {
    %c0_i32 = arith.constant 0 : i32
    %c0_i32_0 = arith.constant 0 : i32
    %c0_i32_1 = arith.constant 0 : i32
    return %c0_i32, %c0_i32_0 : i32, i32
  }
  func.func @transform_8(%arg0: i32) -> (i32, i32) {
    %c0_i32 = arith.constant 0 : i32
    %c0_i32_0 = arith.constant 0 : i32
    %c0_i32_1 = arith.constant 0 : i32
    return %c0_i32, %c0_i32_0 : i32, i32
  }
  func.func @transform_9(%arg0: i32) -> (i32, i32) {
    %c0_i32 = arith.constant 0 : i32
    %c0_i32_0 = arith.constant 0 : i32
    %c0_i32_1 = arith.constant 0 : i32
    return %c0_i32, %c0_i32_0 : i32, i32
  }
  func.func @transform_10(%arg0: i32) -> (i32, i32) {
    %c0_i32 = arith.constant 0 : i32
    %c0_i32_0 = arith.constant 0 : i32
    %c0_i32_1 = arith.constant 0 : i32
    return %c0_i32, %c0_i32_0 : i32, i32
  }
  func.func @transform_11(%arg0: i32) -> (i32, i32) {
    %c0_i32 = arith.constant 0 : i32
    %c0_i32_0 = arith.constant 0 : i32
    %c0_i32_1 = arith.constant 0 : i32
    return %c0_i32, %c0_i32_0 : i32, i32
  }
  func.func @transform_12(%arg0: i32) -> (i32, i32, i32) {
    %c0_i32 = arith.constant 0 : i32
    %c0_i32_0 = arith.constant 0 : i32
    %c0_i32_1 = arith.constant 0 : i32
    return %arg0, %c0_i32, %c0_i32_0 : i32, i32, i32
  }
  func.func @transform_13(%arg0: i32) -> (i32, i32, i32) {
    %c0_i32 = arith.constant 0 : i32
    %c0_i32_0 = arith.constant 0 : i32
    %c0_i32_1 = arith.constant 0 : i32
    return %arg0, %c0_i32, %c0_i32_0 : i32, i32, i32
  }
}

</mosaic_0001>

<llo_original>
// kernel: tpu_custom_call.1
$region0: #{tpu_custom_call.1}
  #allocation0 [shape = 'u32[]', space=smem, size = 0x4, offset = 0x4, fixed_abs, tag = 'smem constant byte address 0x4 - core index']
  #allocation1 [shape = 'u32[144,128]{1,0:T(1,128)}', space=vmem, size = 0x12000, scoped, tag = 'internal scratch']
  #allocation2 [shape = 'bf16[8,768]{1,0:T(8,128)(2,1)}', space=vmem, size = 0x3000, scoped, tag = 'scratch operand']
  #allocation3 [shape = 'f32[72,512]{1,0:T(8,128)}', space=vmem, size = 0x24000, scoped, tag = 'scratch operand']
  %s0 = inlined_call_operand.hbm [shape: f32[1,512], index: 0, kind: input, shape index: {}]
  %s1 = inlined_call_operand.vmem [shape: f32[2,8,512], index: 1, kind: input, shape index: {}]
  %s2 = inlined_call_operand.hbm [shape: bf16[8,72], index: 2, kind: input, shape index: {}]
  %s3 = inlined_call_operand.vmem [shape: f32[8,1], index: 3, kind: input, shape index: {}]
  %s4 = inlined_call_operand.vmem [shape: bf16[8,72], index: 4, kind: input, shape index: {}]
  %s5 = inlined_call_operand.vmem [shape: f32[8,1], index: 5, kind: input, shape index: {}]
  %s6 = inlined_call_operand.hbm [shape: bf16[8,72], index: 6, kind: input, shape index: {}]
  %s7 = inlined_call_operand.vmem [shape: f32[8,1], index: 7, kind: input, shape index: {}]
  %s8 = inlined_call_operand.vmem [shape: bf16[8,8], index: 8, kind: input, shape index: {}]
  %s9 = inlined_call_operand.vmem [shape: f32[8,1], index: 9, kind: input, shape index: {}]
  %s10 = inlined_call_operand.vmem [shape: bf16[12,8], index: 10, kind: input, shape index: {}]
  %s11 = inlined_call_operand.vmem [shape: f32[12,1], index: 11, kind: input, shape index: {}]
  %s12 = inlined_call_operand.hbm [shape: f32[2,4,512], index: 12, kind: output, shape index: {0}]
  %s13 = inlined_call_operand.hbm [shape: f32[2,8,512], index: 13, kind: output, shape index: {1}]
  %14 = xla_tuple %s12, %s13
  %s15 = sld [smem:[#allocation0]]
  $region101: #{tpu_custom_call.1} parent=0
    _
  %s17 = ssub.s32 1, %s15
  %s18 = scalar_select 0, %s17, %s15
  $region1: #{tpu_custom_call.1} parent=0
    #allocation4 [shape = 'u8[2048]{0}', space=vmem, size = 0x800, scoped, tag = 'input window, operand 0, single buffered']
    #allocation5 [shape = 's32[2]{0}', space=sflag, size = 0x8, scoped, tag = 'scoped memory for tpu_custom_call.1']
    #allocation6 [shape = 's32[2]{0}', space=sflag, size = 0x8, scoped, tag = 'scoped memory for tpu_custom_call.1']
    #allocation7 [shape = 'u8[2048]{0}', space=vmem, size = 0x800, scoped, tag = 'input window, operand 2, single buffered']
    #allocation8 [shape = 's32[1]{0}', space=sflag, size = 0x4, scoped, tag = 'scoped memory for tpu_custom_call.1']
    #allocation9 [shape = 'u8[2048]{0}', space=vmem, size = 0x800, scoped, tag = 'input window, operand 6, single buffered']
    #allocation10 [shape = 'u8[16384]{0}', space=vmem, size = 0x4000, scoped, tag = 'output window, operand 0']
    #allocation11 [shape = 'u8[32768]{0}', space=vmem, size = 0x8000, scoped, tag = 'output window, operand 1']
    #allocation12 [shape = 's32[2]{0}', space=sflag, size = 0x8, scoped, tag = 'scoped memory for tpu_custom_call.1']
    %19 = vsyncpa [#allocation5], 0
    %20 = vsyncpa [#allocation8], 0
    %21 = vsyncpa [#allocation6], 0
    %s22 = scalar_lea.sflag [#allocation6], 1
    %23 = vsyncpa %s22, 0
    %24 = vsyncpa [#allocation12], 0
    %s25 = scalar_lea.sflag [#allocation12], 1
    %26 = vsyncpa %s25, 0
    loop: start=0, step=1, limit=4
    $region2: #{tpu_custom_call.1} parent=1 // loop_pre_header
      _
    $region3: #{tpu_custom_call.1} parent=1 // loop_header
      %s28 = sphi 0, %s32
      %p29 = scmp.ge.s32.totalorder %s28, 4
      %s36 = sphi 0, %s36
      %s38 = sphi 0, %s36
      %s39 = sphi 0, %s38
      %s53 = sphi 0, %s39
      %s59 = sphi 0, %s61
      %s62 = sphi 0, %s59
      %s63 = sphi 0, %s62
      %s79 = sphi 0, %s63
      %s83 = sphi 0, %s83
      %s85 = sphi 0, %s83
      %s86 = sphi 0, %s85
      %s100 = sphi 0, %s86
      %s104 = sphi 0, %s104
      %s106 = sphi 0, %s104
      %s107 = sphi 0, %s106
      %s121 = sphi 0, %s107
      %s125 = sphi 0, %s125
      %s127 = sphi 0, %s125
      %s128 = sphi 0, %s127
      %s142 = sphi 0, %s128
      %s146 = sphi 0, %s146
      %s148 = sphi 0, %s146
      %s149 = sphi 0, %s148
      %s163 = sphi 0, %s149
      %s167 = sphi 0, %s167
      %s169 = sphi 0, %s167
      %s170 = sphi 0, %s169
      %s184 = sphi 0, %s170
      %s188 = sphi 0, %s188
      %s190 = sphi 0, %s188
      %s191 = sphi 0, %s190
      %s205 = sphi 0, %s191
      %s209 = sphi 0, %s209
      %s211 = sphi 0, %s209
      %s212 = sphi 0, %s211
      %s226 = sphi 0, %s212
      %s230 = sphi 0, %s230
      %s232 = sphi 0, %s230
      %s233 = sphi 0, %s232
      %s247 = sphi 0, %s233
      %s251 = sphi 0, %s251
      %s253 = sphi 0, %s251
      %s254 = sphi 0, %s253
      %s268 = sphi 0, %s254
      %s272 = sphi 0, %s272
      %s274 = sphi 0, %s272
      %s275 = sphi 0, %s274
      %s289 = sphi 0, %s275
      %s295 = sphi 0, %s297
      %s298 = sphi 0, %s295
      %s299 = sphi 0, %s298
      %s315 = sphi 0, %s299
      %s321 = sphi 0, %s323
      %s324 = sphi 0, %s321
      %s325 = sphi 0, %s324
      %s341 = sphi 0, %s325
    $region4: #{tpu_custom_call.1} parent=1 // loop_header_branch
      %31 = sbr.rel (%p29) target = $region8
    $region5: #{tpu_custom_call.1} parent=1 // loop_body
      %s33 = ssub.s32 %s28, 1
      %s34 = ssub.s32 %s28, 2
      %s35 = sadd.s32 %s28, 1
      %s37 = sadd.s32 %s36, 1
      %p40 = scmp.eq.s32.totalorder %s28, 1
      %p41 = scmp.ne.s32.totalorder %s36, %s38
      %p42 = scmp.eq.s32.totalorder %s28, 0
      %p43 = por %p41, %p42
      %p44 = scmp.ne.s32.totalorder %s36, %s38
      %p45 = scmp.eq.s32.totalorder %s33, 1
      %p46 = por %p44, %p45
      %p47 = scmp.ne.s32.totalorder %s38, %s39
      %p48 = scmp.eq.s32.totalorder %s33, 0
      %p49 = por %p47, %p48
      %p50 = scmp.ne.s32.totalorder %s38, %s39
      %p51 = scmp.eq.s32.totalorder %s34, 1
      %p52 = por %p50, %p51
      %p54 = scmp.ne.s32.totalorder %s39, %s53
      %p55 = scmp.eq.s32.totalorder %s34, 0
      %p56 = por %p54, %p55
      %s57 = ssub.s32 %s28, %s35
      %p58 = scmp.eq.s32.totalorder %s57, 0
      %s60 = sadd.s32 %s59, 1
      %s61 = scalar_select %p58, %s59, %s60
      %p64 = pneg %p58
      %p65 = scmp.eq.s32.totalorder %s28, 1
      %p66 = por %p64, %p65
      %p67 = scmp.ne.s32.totalorder %s59, %s62
      %p68 = scmp.eq.s32.totalorder %s28, 0
      %p69 = por %p67, %p68
      %p70 = scmp.ne.s32.totalorder %s59, %s62
      %p71 = scmp.eq.s32.totalorder %s33, 1
      %p72 = por %p70, %p71
      %p73 = scmp.ne.s32.totalorder %s62, %s63
      %p74 = scmp.eq.s32.totalorder %s33, 0
      %p75 = por %p73, %p74
      %p76 = scmp.ne.s32.totalorder %s62, %s63
      %p77 = scmp.eq.s32.totalorder %s34, 1
      %p78 = por %p76, %p77
      %p80 = scmp.ne.s32.totalorder %s63, %s79
      %p81 = scmp.eq.s32.totalorder %s34, 0
      %p82 = por %p80, %p81
      %s84 = sadd.s32 %s83, 1
      %p87 = scmp.eq.s32.totalorder %s28, 1
      %p88 = scmp.ne.s32.totalorder %s83, %s85
      %p89 = scmp.eq.s32.totalorder %s28, 0
      %p90 = por %p88, %p89
      %p91 = scmp.ne.s32.totalorder %s83, %s85
      %p92 = scmp.eq.s32.totalorder %s33, 1
      %p93 = por %p91, %p92
      %p94 = scmp.ne.s32.totalorder %s85, %s86
      %p95 = scmp.eq.s32.totalorder %s33, 0
      %p96 = por %p94, %p95
      %p97 = scmp.ne.s32.totalorder %s85, %s86
      %p98 = scmp.eq.s32.totalorder %s34, 1
      %p99 = por %p97, %p98
      %p101 = scmp.ne.s32.totalorder %s86, %s100
      %p102 = scmp.eq.s32.totalorder %s34, 0
      %p103 = por %p101, %p102
      %s105 = sadd.s32 %s104, 1
      %p108 = scmp.eq.s32.totalorder %s28, 1
      %p109 = scmp.ne.s32.totalorder %s104, %s106
      %p110 = scmp.eq.s32.totalorder %s28, 0
      %p111 = por %p109, %p110
      %p112 = scmp.ne.s32.totalorder %s104, %s106
      %p113 = scmp.eq.s32.totalorder %s33, 1
      %p114 = por %p112, %p113
      %p115 = scmp.ne.s32.totalorder %s106, %s107
      %p116 = scmp.eq.s32.totalorder %s33, 0
      %p117 = por %p115, %p116
      %p118 = scmp.ne.s32.totalorder %s106, %s107
      %p119 = scmp.eq.s32.totalorder %s34, 1
      %p120 = por %p118, %p119
      %p122 = scmp.ne.s32.totalorder %s107, %s121
      %p123 = scmp.eq.s32.totalorder %s34, 0
      %p124 = por %p122, %p123
      %s126 = sadd.s32 %s125, 1
      %p129 = scmp.eq.s32.totalorder %s28, 1
      %p130 = scmp.ne.s32.totalorder %s125, %s127
      %p131 = scmp.eq.s32.totalorder %s28, 0
      %p132 = por %p130, %p131
      %p133 = scmp.ne.s32.totalorder %s125, %s127
      %p134 = scmp.eq.s32.totalorder %s33, 1
      %p135 = por %p133, %p134
      %p136 = scmp.ne.s32.totalorder %s127, %s128
      %p137 = scmp.eq.s32.totalorder %s33, 0
      %p138 = por %p136, %p137
      %p139 = scmp.ne.s32.totalorder %s127, %s128
      %p140 = scmp.eq.s32.totalorder %s34, 1
      %p141 = por %p139, %p140
      %p143 = scmp.ne.s32.totalorder %s128, %s142
      %p144 = scmp.eq.s32.totalorder %s34, 0
      %p145 = por %p143, %p144
      %s147 = sadd.s32 %s146, 1
      %p150 = scmp.eq.s32.totalorder %s28, 1
      %p151 = scmp.ne.s32.totalorder %s146, %s148
      %p152 = scmp.eq.s32.totalorder %s28, 0
      %p153 = por %p151, %p152
      %p154 = scmp.ne.s32.totalorder %s146, %s148
      %p155 = scmp.eq.s32.totalorder %s33, 1
      %p156 = por %p154, %p155
      %p157 = scmp.ne.s32.totalorder %s148, %s149
      %p158 = scmp.eq.s32.totalorder %s33, 0
      %p159 = por %p157, %p158
      %p160 = scmp.ne.s32.totalorder %s148, %s149
      %p161 = scmp.eq.s32.totalorder %s34, 1
      %p162 = por %p160, %p161
      %p164 = scmp.ne.s32.totalorder %s149, %s163
      %p165 = scmp.eq.s32.totalorder %s34, 0
      %p166 = por %p164, %p165
      %s168 = sadd.s32 %s167, 1
      %p171 = scmp.eq.s32.totalorder %s28, 1
      %p172 = scmp.ne.s32.totalorder %s167, %s169
      %p173 = scmp.eq.s32.totalorder %s28, 0
      %p174 = por %p172, %p173
      %p175 = scmp.ne.s32.totalorder %s167, %s169
      %p176 = scmp.eq.s32.totalorder %s33, 1
      %p177 = por %p175, %p176
      %p178 = scmp.ne.s32.totalorder %s169, %s170
      %p179 = scmp.eq.s32.totalorder %s33, 0
      %p180 = por %p178, %p179
      %p181 = scmp.ne.s32.totalorder %s169, %s170
      %p182 = scmp.eq.s32.totalorder %s34, 1
      %p183 = por %p181, %p182
      %p185 = scmp.ne.s32.totalorder %s170, %s184
      %p186 = scmp.eq.s32.totalorder %s34, 0
      %p187 = por %p185, %p186
      %s189 = sadd.s32 %s188, 1
      %p192 = scmp.eq.s32.totalorder %s28, 1
      %p193 = scmp.ne.s32.totalorder %s188, %s190
      %p194 = scmp.eq.s32.totalorder %s28, 0
      %p195 = por %p193, %p194
      %p196 = scmp.ne.s32.totalorder %s188, %s190
      %p197 = scmp.eq.s32.totalorder %s33, 1
      %p198 = por %p196, %p197
      %p199 = scmp.ne.s32.totalorder %s190, %s191
      %p200 = scmp.eq.s32.totalorder %s33, 0
      %p201 = por %p199, %p200
      %p202 = scmp.ne.s32.totalorder %s190, %s191
      %p203 = scmp.eq.s32.totalorder %s34, 1
      %p204 = por %p202, %p203
      %p206 = scmp.ne.s32.totalorder %s191, %s205
      %p207 = scmp.eq.s32.totalorder %s34, 0
      %p208 = por %p206, %p207
      %s210 = sadd.s32 %s209, 1
      %p213 = scmp.eq.s32.totalorder %s28, 1
      %p214 = scmp.ne.s32.totalorder %s209, %s211
      %p215 = scmp.eq.s32.totalorder %s28, 0
      %p216 = por %p214, %p215
      %p217 = scmp.ne.s32.totalorder %s209, %s211
      %p218 = scmp.eq.s32.totalorder %s33, 1
      %p219 = por %p217, %p218
      %p220 = scmp.ne.s32.totalorder %s211, %s212
      %p221 = scmp.eq.s32.totalorder %s33, 0
      %p222 = por %p220, %p221
      %p223 = scmp.ne.s32.totalorder %s211, %s212
      %p224 = scmp.eq.s32.totalorder %s34, 1
      %p225 = por %p223, %p224
      %p227 = scmp.ne.s32.totalorder %s212, %s226
      %p228 = scmp.eq.s32.totalorder %s34, 0
      %p229 = por %p227, %p228
      %s231 = sadd.s32 %s230, 1
      %p234 = scmp.eq.s32.totalorder %s28, 1
      %p235 = scmp.ne.s32.totalorder %s230, %s232
      %p236 = scmp.eq.s32.totalorder %s28, 0
      %p237 = por %p235, %p236
      %p238 = scmp.ne.s32.totalorder %s230, %s232
      %p239 = scmp.eq.s32.totalorder %s33, 1
      %p240 = por %p238, %p239
      %p241 = scmp.ne.s32.totalorder %s232, %s233
      %p242 = scmp.eq.s32.totalorder %s33, 0
      %p243 = por %p241, %p242
      %p244 = scmp.ne.s32.totalorder %s232, %s233
      %p245 = scmp.eq.s32.totalorder %s34, 1
      %p246 = por %p244, %p245
      %p248 = scmp.ne.s32.totalorder %s233, %s247
      %p249 = scmp.eq.s32.totalorder %s34, 0
      %p250 = por %p248, %p249
      %s252 = sadd.s32 %s251, 1
      %p255 = scmp.eq.s32.totalorder %s28, 1
      %p256 = scmp.ne.s32.totalorder %s251, %s253
      %p257 = scmp.eq.s32.totalorder %s28, 0
      %p258 = por %p256, %p257
      %p259 = scmp.ne.s32.totalorder %s251, %s253
      %p260 = scmp.eq.s32.totalorder %s33, 1
      %p261 = por %p259, %p260
      %p262 = scmp.ne.s32.totalorder %s253, %s254
      %p263 = scmp.eq.s32.totalorder %s33, 0
      %p264 = por %p262, %p263
      %p265 = scmp.ne.s32.totalorder %s253, %s254
      %p266 = scmp.eq.s32.totalorder %s34, 1
      %p267 = por %p265, %p266
      %p269 = scmp.ne.s32.totalorder %s254, %s268
      %p270 = scmp.eq.s32.totalorder %s34, 0
      %p271 = por %p269, %p270
      %s273 = sadd.s32 %s272, 1
      %p276 = scmp.eq.s32.totalorder %s28, 1
      %p277 = scmp.ne.s32.totalorder %s272, %s274
      %p278 = scmp.eq.s32.totalorder %s28, 0
      %p279 = por %p277, %p278
      %p280 = scmp.ne.s32.totalorder %s272, %s274
      %p281 = scmp.eq.s32.totalorder %s33, 1
      %p282 = por %p280, %p281
      %p283 = scmp.ne.s32.totalorder %s274, %s275
      %p284 = scmp.eq.s32.totalorder %s33, 0
      %p285 = por %p283, %p284
      %p286 = scmp.ne.s32.totalorder %s274, %s275
      %p287 = scmp.eq.s32.totalorder %s34, 1
      %p288 = por %p286, %p287
      %p290 = scmp.ne.s32.totalorder %s275, %s289
      %p291 = scmp.eq.s32.totalorder %s34, 0
      %p292 = por %p290, %p291
      %s293 = ssub.s32 %s28, %s35
      %p294 = scmp.eq.s32.totalorder %s293, 0
      %s296 = sadd.s32 %s295, 1
      %s297 = scalar_select %p294, %s295, %s296
      %p300 = pneg %p294
      %p301 = scmp.eq.s32.totalorder %s28, 1
      %p302 = por %p300, %p301
      %p303 = scmp.ne.s32.totalorder %s295, %s298
      %p304 = scmp.eq.s32.totalorder %s28, 0
      %p305 = por %p303, %p304
      %p306 = scmp.ne.s32.totalorder %s295, %s298
      %p307 = scmp.eq.s32.totalorder %s33, 1
      %p308 = por %p306, %p307
      %p309 = scmp.ne.s32.totalorder %s298, %s299
      %p310 = scmp.eq.s32.totalorder %s33, 0
      %p311 = por %p309, %p310
      %p312 = scmp.ne.s32.totalorder %s298, %s299
      %p313 = scmp.eq.s32.totalorder %s34, 1
      %p314 = por %p312, %p313
      %p316 = scmp.ne.s32.totalorder %s299, %s315
      %p317 = scmp.eq.s32.totalorder %s34, 0
      %p318 = por %p316, %p317
      %s319 = ssub.s32 %s28, %s35
      %p320 = scmp.eq.s32.totalorder %s319, 0
      %s322 = sadd.s32 %s321, 1
      %s323 = scalar_select %p320, %s321, %s322
      %p326 = pneg %p320
      %p327 = scmp.eq.s32.totalorder %s28, 1
      %p328 = por %p326, %p327
      %p329 = scmp.ne.s32.totalorder %s321, %s324
      %p330 = scmp.eq.s32.totalorder %s28, 0
      %p331 = por %p329, %p330
      %p332 = scmp.ne.s32.totalorder %s321, %s324
      %p333 = scmp.eq.s32.totalorder %s33, 1
      %p334 = por %p332, %p333
      %p335 = scmp.ne.s32.totalorder %s324, %s325
      %p336 = scmp.eq.s32.totalorder %s33, 0
      %p337 = por %p335, %p336
      %p338 = scmp.ne.s32.totalorder %s324, %s325
      %p339 = scmp.eq.s32.totalorder %s34, 1
      %p340 = por %p338, %p339
      %p342 = scmp.ne.s32.totalorder %s325, %s341
      %p343 = scmp.eq.s32.totalorder %s34, 0
      %p344 = por %p342, %p343
      %p345 = scmp.le.s32.totalorder 1, %s28
      %p346 = scmp.lt.s32.totalorder %s28, 3
      %p347 = pnand %p345, %p346
      %p348 = pneg %p347
      // Predicated region
      $region9: #{tpu_custom_call.1} parent=5 // pred_check
        _
      $region10: #{tpu_custom_call.1} parent=5 // pred_check_branch
        %350 = sbr.rel (%p347) target = $region12
      $region11: #{tpu_custom_call.1} parent=5 // pred_region
        %s351 = ssub.s32 %s28, 1
        // Predicated region
        $region13: #{tpu_custom_call.1} parent=11 // pred_check
          %p352 = pneg %p49
        $region14: #{tpu_custom_call.1} parent=11 // pred_check_branch
          %354 = sbr.rel (%p352) target = $region16
        $region15: #{tpu_custom_call.1} parent=11 // pred_region
          %s356 = ssub.s32 64, 64
          %357 = vsyncadd [#allocation5], %s356
          %s359 = sshll.u32 [#allocation4], 4
          %s360 = int_to_ptr.vmem [resolvable:$true] %s359
          %362 = dma.hbm_to_vmem [thread:$0]  %s0, 64, %s360, [#allocation5]
        $region16: #{tpu_custom_call.1} parent=11 // pred_fallthru
          _
        // Predicated region
        $region17: #{tpu_custom_call.1} parent=11 // pred_check
          %p363 = pneg %p96
        $region18: #{tpu_custom_call.1} parent=11 // pred_check_branch
          %365 = sbr.rel (%p363) target = $region20
        $region19: #{tpu_custom_call.1} parent=11 // pred_region
          %s367 = ssub.s32 64, 64
          %368 = vsyncadd [#allocation8], %s367
          %s370 = sshll.u32 [#allocation7], 4
          %s371 = int_to_ptr.vmem [resolvable:$true] %s370
          %373 = dma.hbm_to_vmem [thread:$0]  %s2, 64, %s371, [#allocation8]
        $region20: #{tpu_custom_call.1} parent=11 // pred_fallthru
          _
        // Predicated region
        $region21: #{tpu_custom_call.1} parent=11 // pred_check
          %p374 = pneg %p117
        $region22: #{tpu_custom_call.1} parent=11 // pred_check_branch
          %376 = sbr.rel (%p374) target = $region24
        $region23: #{tpu_custom_call.1} parent=11 // pred_region
          _
        $region24: #{tpu_custom_call.1} parent=11 // pred_fallthru
          _
        // Predicated region
        $region25: #{tpu_custom_call.1} parent=11 // pred_check
          %p377 = pneg %p138
        $region26: #{tpu_custom_call.1} parent=11 // pred_check_branch
          %379 = sbr.rel (%p377) target = $region28
        $region27: #{tpu_custom_call.1} parent=11 // pred_region
          _
        $region28: #{tpu_custom_call.1} parent=11 // pred_fallthru
          _
        // Predicated region
        $region29: #{tpu_custom_call.1} parent=11 // pred_check
          %p380 = pneg %p159
        $region30: #{tpu_custom_call.1} parent=11 // pred_check_branch
          %382 = sbr.rel (%p380) target = $region32
        $region31: #{tpu_custom_call.1} parent=11 // pred_region
          _
        $region32: #{tpu_custom_call.1} parent=11 // pred_fallthru
          _
        // Predicated region
        $region33: #{tpu_custom_call.1} parent=11 // pred_check
          %p383 = pneg %p180
        $region34: #{tpu_custom_call.1} parent=11 // pred_check_branch
          %385 = sbr.rel (%p383) target = $region36
        $region35: #{tpu_custom_call.1} parent=11 // pred_region
          %s387 = ssub.s32 64, 64
          %388 = vsyncadd [#allocation8], %s387
          %s390 = sshll.u32 [#allocation9], 4
          %s391 = int_to_ptr.vmem [resolvable:$true] %s390
          %393 = dma.hbm_to_vmem [thread:$0]  %s6, 64, %s391, [#allocation8]
        $region36: #{tpu_custom_call.1} parent=11 // pred_fallthru
          _
        // Predicated region
        $region37: #{tpu_custom_call.1} parent=11 // pred_check
          %p394 = pneg %p201
        $region38: #{tpu_custom_call.1} parent=11 // pred_check_branch
          %396 = sbr.rel (%p394) target = $region40
        $region39: #{tpu_custom_call.1} parent=11 // pred_region
          _
        $region40: #{tpu_custom_call.1} parent=11 // pred_fallthru
          _
        // Predicated region
        $region41: #{tpu_custom_call.1} parent=11 // pred_check
          %p397 = pneg %p222
        $region42: #{tpu_custom_call.1} parent=11 // pred_check_branch
          %399 = sbr.rel (%p397) target = $region44
        $region43: #{tpu_custom_call.1} parent=11 // pred_region
          _
        $region44: #{tpu_custom_call.1} parent=11 // pred_fallthru
          _
        // Predicated region
        $region45: #{tpu_custom_call.1} parent=11 // pred_check
          %p400 = pneg %p243
        $region46: #{tpu_custom_call.1} parent=11 // pred_check_branch
          %402 = sbr.rel (%p400) target = $region48
        $region47: #{tpu_custom_call.1} parent=11 // pred_region
          _
        $region48: #{tpu_custom_call.1} parent=11 // pred_fallthru
          _
        // Predicated region
        $region49: #{tpu_custom_call.1} parent=11 // pred_check
          %p403 = pneg %p264
        $region50: #{tpu_custom_call.1} parent=11 // pred_check_branch
          %405 = sbr.rel (%p403) target = $region52
        $region51: #{tpu_custom_call.1} parent=11 // pred_region
          _
        $region52: #{tpu_custom_call.1} parent=11 // pred_fallthru
          _
        // Predicated region
        $region53: #{tpu_custom_call.1} parent=11 // pred_check
          %p406 = pneg %p285
        $region54: #{tpu_custom_call.1} parent=11 // pred_check_branch
          %408 = sbr.rel (%p406) target = $region56
        $region55: #{tpu_custom_call.1} parent=11 // pred_region
          _
        $region56: #{tpu_custom_call.1} parent=11 // pred_fallthru
          _
      $region12: #{tpu_custom_call.1} parent=5 // pred_fallthru
        _
      %p409 = scmp.lt.s32.totalorder %s28, 2
      // Predicated region
      $region57: #{tpu_custom_call.1} parent=5 // pred_check
        %p410 = pneg %p409
      $region58: #{tpu_custom_call.1} parent=5 // pred_check_branch
        %412 = sbr.rel (%p410) target = $region60
      $region59: #{tpu_custom_call.1} parent=5 // pred_region
        // Predicated region
        $region61: #{tpu_custom_call.1} parent=59 // pred_check
          %p413 = pneg %p69
        $region62: #{tpu_custom_call.1} parent=59 // pred_check_branch
          %415 = sbr.rel (%p413) target = $region64
        $region63: #{tpu_custom_call.1} parent=59 // pred_region
          %p416 = scmp.lt.s32.totalorder %s28, 1
          %s417 = scalar_select %p416, %s28, 1
          %s418 = smul.addr %s417, 4
          %s419 = smul.addr %s418, 8
          %s420 = scalar_lea.vmem %s1, %s419
        $region64: #{tpu_custom_call.1} parent=59 // pred_fallthru
          _
      $region60: #{tpu_custom_call.1} parent=5 // pred_fallthru
        _
      %p421 = scmp.le.s32.totalorder 1, %s28
      %p422 = scmp.lt.s32.totalorder %s28, 3
      %p423 = pnand %p421, %p422
      %p424 = pneg %p423
      // Predicated region
      $region65: #{tpu_custom_call.1} parent=5 // pred_check
        _
      $region66: #{tpu_custom_call.1} parent=5 // pred_check_branch
        %426 = sbr.rel (%p423) target = $region68
      $region67: #{tpu_custom_call.1} parent=5 // pred_region
        %s427 = ssub.s32 %s28, 1
        // Predicated region
        $region69: #{tpu_custom_call.1} parent=67 // pred_check
          %p428 = pneg %p49
        $region70: #{tpu_custom_call.1} parent=67 // pred_check_branch
          %430 = sbr.rel (%p428) target = $region72
        $region71: #{tpu_custom_call.1} parent=67 // pred_region
          %431 = dma.done [#allocation5], 64
        $region72: #{tpu_custom_call.1} parent=67 // pred_fallthru
          _
        // Predicated region
        $region73: #{tpu_custom_call.1} parent=67 // pred_check
          %p432 = pneg %p96
        $region74: #{tpu_custom_call.1} parent=67 // pred_check_branch
          %434 = sbr.rel (%p432) target = $region76
        $region75: #{tpu_custom_call.1} parent=67 // pred_region
          %435 = dma.done [#allocation8], 64
        $region76: #{tpu_custom_call.1} parent=67 // pred_fallthru
          _
        // Predicated region
        $region77: #{tpu_custom_call.1} parent=67 // pred_check
          %p436 = pneg %p180
        $region78: #{tpu_custom_call.1} parent=67 // pred_check_branch
          %438 = sbr.rel (%p436) target = $region80
        $region79: #{tpu_custom_call.1} parent=67 // pred_region
          %439 = dma.done [#allocation8], 64
        $region80: #{tpu_custom_call.1} parent=67 // pred_fallthru
          _
        %p440 = pneg %p49
        %p441 = pneg %p46
        %p442 = scmp.lt.s32.totalorder %s33, 1
        %s443 = scalar_select %p442, %s33, 1
        %s444 = smul.addr %s443, 4
        %s445 = smul.addr %s444, 8
        %s446 = scalar_lea.vmem %s1, %s445
        %p447 = pneg %p75
        %p448 = pneg %p72
        %p449 = pneg %p96
        %p450 = pneg %p93
        %p451 = pneg %p117
        %p452 = pneg %p114
        %p453 = pneg %p138
        %p454 = pneg %p135
        %p455 = pneg %p159
        %p456 = pneg %p156
        %p457 = pneg %p180
        %p458 = pneg %p177
        %p459 = pneg %p201
        %p460 = pneg %p198
        %p461 = pneg %p222
        %p462 = pneg %p219
        %p463 = pneg %p243
        %p464 = pneg %p240
        %p465 = pneg %p264
        %p466 = pneg %p261
        %p467 = pneg %p285
        %p468 = pneg %p282
        %p469 = pneg %p311
        %p470 = pneg %p308
        %s471 = sand.u32 %s298, 1
        %s472 = scalar_lea.sflag [#allocation6], %s471
        %s473 = sand.u32 %s298, 1
        %s474 = smul.addr %s473, 16
        %s475 = scalar_lea.vmem [#allocation10], %s474
        %p476 = pneg %p337
        %p477 = pneg %p334
        %s478 = sand.u32 %s324, 1
        %s479 = scalar_lea.sflag [#allocation12], %s478
        %s480 = sand.u32 %s324, 1
        %s481 = smul.addr %s480, 32
        %s482 = scalar_lea.vmem [#allocation11], %s481
        %p483 = scmp.lt.s32.totalorder %s33, 1
        %s484 = scalar_select %p483, %s33, 1
        %s485 = smul.addr %s484, 4
        %s486 = smul.addr %s485, 8
        %s487 = scalar_lea.vmem %s1, %s486
        %489 = vst [vmem:[#allocation2] sm:$0xf] 0
        %490 = vst [vmem:[#allocation2 + $0x14] sm:$0xf] 0
        %v491 = vld [vmem:[#allocation4] sm:$0xf]
        %v493 = vlaneseq
        %v494 = vshrl.u32 %v493, 7
        %v495 = vsub.s32 0, %v494
        %v496 = vrot.slane %v491, %v495
        %v497 = vlaneseq
        %v498 = vshrl.u32 %v497, 7
        %v499 = vsub.s32 1, %v498
        %v500 = vrot.slane %v491, %v499
        %v501 = vlaneseq
        %v502 = vshrl.u32 %v501, 7
        %v503 = vsub.s32 2, %v502
        %v504 = vrot.slane %v491, %v503
        %v505 = vlaneseq
        %v506 = vshrl.u32 %v505, 7
        %v507 = vsub.s32 3, %v506
        %v508 = vrot.slane %v491, %v507
        %v513 = vld [vmem:[%s487] sm:$0xff]
        %v514 = vld [vmem:[%s487 + $0x8] sm:$0xff]
        %v515 = vld [vmem:[%s487 + $0x10] sm:$0xff]
        %v516 = vld [vmem:[%s487 + $0x18] sm:$0xff]
        %v517 = vpack.c.bf16 %v513, %v513
        %v518 = vpack.c.bf16 %v514, %v514
        %v519 = vpack.c.bf16 %v515, %v515
        %v520 = vpack.c.bf16 %v516, %v516
        %v525 = vunpack.c.l.b16 %v517
        %v526 = vunpack.c.l.b16 %v518
        %v527 = vunpack.c.l.b16 %v519
        %v528 = vunpack.c.l.b16 %v520
        %v529 = vpack.c.b16 %v526, %v525
        %v530 = vpack.c.b16 %v528, %v527
        %533 = vst [vmem:[#allocation2 + $0x4] sm:$0xff] %v529
        %534 = vst [vmem:[#allocation2 + $0xc] sm:$0xff] %v530
        %v535 = vld [vmem:[#allocation2] sm:$0xff]
        %v536 = vld [vmem:[#allocation2 + $0x8] sm:$0xff]
        %v537 = vld [vmem:[#allocation2 + $0x10] sm:$0xf]
        %v538 = vunpack.c.l.bf16 %v535
        %v539 = vunpack.c.h.bf16 %v535
        %v540 = vunpack.c.l.bf16 %v536
        %v541 = vunpack.c.h.bf16 %v536
        %v542 = vunpack.c.l.bf16 %v537
        %548 = vrot.lane.b32.xlu0 %v538, 42
        %v549 = vpop.permute.xlu0 %548
        %550 = vrot.lane.b32.xlu0 %v539, 42
        %v551 = vpop.permute.xlu0 %550
        %552 = vrot.lane.b32.xlu0 %v540, 42
        %v553 = vpop.permute.xlu0 %552
        %554 = vrot.lane.b32.xlu0 %v541, 42
        %v555 = vpop.permute.xlu0 %554
        %556 = vrot.lane.b32.xlu0 %v542, 42
        %v557 = vpop.permute.xlu0 %556
        %vm558 = vcmask 343040
        %v559 = vsel %vm558, %v549, %v551
        %v560 = vsel %vm558, %v551, %v553
        %v561 = vsel %vm558, %v553, %v555
        %v562 = vsel %vm558, %v555, %v557
        %567 = vst [vmem:[#allocation3] sm:$0xff] %v559
        %568 = vst [vmem:[#allocation3 + $0x8] sm:$0xff] %v560
        %569 = vst [vmem:[#allocation3 + $0x10] sm:$0xff] %v561
        %570 = vst [vmem:[#allocation3 + $0x18] sm:$0xff] %v562
        %v571 = vld [vmem:[#allocation2] sm:$0xff]
        %v572 = vld [vmem:[#allocation2 + $0x8] sm:$0xff]
        %v573 = vld [vmem:[#allocation2 + $0x10] sm:$0xf]
        %v574 = vunpack.c.l.bf16 %v571
        %v575 = vunpack.c.h.bf16 %v571
        %v576 = vunpack.c.l.bf16 %v572
        %v577 = vunpack.c.h.bf16 %v572
        %v578 = vunpack.c.l.bf16 %v573
        %584 = vrot.lane.b32.xlu0 %v574, 40
        %v585 = vpop.permute.xlu0 %584
        %586 = vrot.lane.b32.xlu0 %v575, 40
        %v587 = vpop.permute.xlu0 %586
        %588 = vrot.lane.b32.xlu0 %v576, 40
        %v589 = vpop.permute.xlu0 %588
        %590 = vrot.lane.b32.xlu0 %v577, 40
        %v591 = vpop.permute.xlu0 %590
        %592 = vrot.lane.b32.xlu0 %v578, 40
        %v593 = vpop.permute.xlu0 %592
        %vm594 = vcmask 326656
        %v595 = vsel %vm594, %v585, %v587
        %v596 = vsel %vm594, %v587, %v589
        %v597 = vsel %vm594, %v589, %v591
        %v598 = vsel %vm594, %v591, %v593
        %603 = vst [vmem:[#allocation3 + $0x20] sm:$0xff] %v595
        %604 = vst [vmem:[#allocation3 + $0x28] sm:$0xff] %v596
        %605 = vst [vmem:[#allocation3 + $0x30] sm:$0xff] %v597
        %606 = vst [vmem:[#allocation3 + $0x38] sm:$0xff] %v598
        %v607 = vld [vmem:[#allocation2] sm:$0xff]
        %v608 = vld [vmem:[#allocation2 + $0x8] sm:$0xff]
        %v609 = vld [vmem:[#allocation2 + $0x10] sm:$0xf]
        %v610 = vunpack.c.l.bf16 %v607
        %v611 = vunpack.c.h.bf16 %v607
        %v612 = vunpack.c.l.bf16 %v608
        %v613 = vunpack.c.h.bf16 %v608
        %v614 = vunpack.c.l.bf16 %v609
        %620 = vrot.lane.b32.xlu0 %v610, 38
        %v621 = vpop.permute.xlu0 %620
        %622 = vrot.lane.b32.xlu0 %v611, 38
        %v623 = vpop.permute.xlu0 %622
        %624 = vrot.lane.b32.xlu0 %v612, 38
        %v625 = vpop.permute.xlu0 %624
        %626 = vrot.lane.b32.xlu0 %v613, 38
        %v627 = vpop.permute.xlu0 %626
        %628 = vrot.lane.b32.xlu0 %v614, 38
        %v629 = vpop.permute.xlu0 %628
        %vm630 = vcmask 310272
        %v631 = vsel %vm630, %v621, %v623
        %v632 = vsel %vm630, %v623, %v625
        %v633 = vsel %vm630, %v625, %v627
        %v634 = vsel %vm630, %v627, %v629
        %639 = vst [vmem:[#allocation3 + $0x40] sm:$0xff] %v631
        %640 = vst [vmem:[#allocation3 + $0x48] sm:$0xff] %v632
        %641 = vst [vmem:[#allocation3 + $0x50] sm:$0xff] %v633
        %642 = vst [vmem:[#allocation3 + $0x58] sm:$0xff] %v634
        %v643 = vld [vmem:[#allocation2] sm:$0xff]
        %v644 = vld [vmem:[#allocation2 + $0x8] sm:$0xff]
        %v645 = vld [vmem:[#allocation2 + $0x10] sm:$0xf]
        %v646 = vunpack.c.l.bf16 %v643
        %v647 = vunpack.c.h.bf16 %v643
        %v648 = vunpack.c.l.bf16 %v644
        %v649 = vunpack.c.h.bf16 %v644
        %v650 = vunpack.c.l.bf16 %v645
        %656 = vrot.lane.b32.xlu0 %v646, 2
        %v657 = vpop.permute.xlu0 %656
        %658 = vrot.lane.b32.xlu0 %v647, 2
        %v659 = vpop.permute.xlu0 %658
        %660 = vrot.lane.b32.xlu0 %v648, 2
        %v661 = vpop.permute.xlu0 %660
        %662 = vrot.lane.b32.xlu0 %v649, 2
        %v663 = vpop.permute.xlu0 %662
        %664 = vrot.lane.b32.xlu0 %v650, 2
        %v665 = vpop.permute.xlu0 %664
        %vm666 = vcmask 15360
        %v667 = vsel %vm666, %v657, %v659
        %v668 = vsel %vm666, %v659, %v661
        %v669 = vsel %vm666, %v661, %v663
        %v670 = vsel %vm666, %v663, %v665
        %675 = vst [vmem:[#allocation3 + $0x60] sm:$0xff] %v667
        %676 = vst [vmem:[#allocation3 + $0x68] sm:$0xff] %v668
        %677 = vst [vmem:[#allocation3 + $0x70] sm:$0xff] %v669
        %678 = vst [vmem:[#allocation3 + $0x78] sm:$0xff] %v670
        %v679 = vld [vmem:[#allocation2 + $0x4] sm:$0xff]
        %v680 = vld [vmem:[#allocation2 + $0xc] sm:$0xff]
        %v681 = vunpack.c.l.bf16 %v679
        %v682 = vunpack.c.h.bf16 %v679
        %v683 = vunpack.c.l.bf16 %v680
        %v684 = vunpack.c.h.bf16 %v680
        %685 = vst [vmem:[#allocation3 + $0x80] sm:$0xff] %v681
        %686 = vst [vmem:[#allocation3 + $0x88] sm:$0xff] %v682
        %687 = vst [vmem:[#allocation3 + $0x90] sm:$0xff] %v683
        %688 = vst [vmem:[#allocation3 + $0x98] sm:$0xff] %v684
        %v689 = vld [vmem:[#allocation2 + $0x4] sm:$0xff]
        %v690 = vld [vmem:[#allocation2 + $0xc] sm:$0xff]
        %v691 = vld [vmem:[#allocation2 + $0x14] sm:$0xf]
        %v692 = vunpack.c.l.bf16 %v689
        %v693 = vunpack.c.h.bf16 %v689
        %v694 = vunpack.c.l.bf16 %v690
        %v695 = vunpack.c.h.bf16 %v690
        %v696 = vunpack.c.l.bf16 %v691
        %702 = vrot.lane.b32.xlu0 %v692, 126
        %v703 = vpop.permute.xlu0 %702
        %704 = vrot.lane.b32.xlu0 %v693, 126
        %v705 = vpop.permute.xlu0 %704
        %706 = vrot.lane.b32.xlu0 %v694, 126
        %v707 = vpop.permute.xlu0 %706
        %708 = vrot.lane.b32.xlu0 %v695, 126
        %v709 = vpop.permute.xlu0 %708
        %710 = vrot.lane.b32.xlu0 %v696, 126
        %v711 = vpop.permute.xlu0 %710
        %vm712 = vcmask 1031168
        %v713 = vsel %vm712, %v703, %v705
        %v714 = vsel %vm712, %v705, %v707
        %v715 = vsel %vm712, %v707, %v709
        %v716 = vsel %vm712, %v709, %v711
        %721 = vst [vmem:[#allocation3 + $0xa0] sm:$0xff] %v713
        %722 = vst [vmem:[#allocation3 + $0xa8] sm:$0xff] %v714
        %723 = vst [vmem:[#allocation3 + $0xb0] sm:$0xff] %v715
        %724 = vst [vmem:[#allocation3 + $0xb8] sm:$0xff] %v716
        %v725 = vld [vmem:[#allocation2 + $0x4] sm:$0xff]
        %v726 = vld [vmem:[#allocation2 + $0xc] sm:$0xff]
        %v727 = vld [vmem:[#allocation2 + $0x14] sm:$0xf]
        %v728 = vunpack.c.l.bf16 %v725
        %v729 = vunpack.c.h.bf16 %v725
        %v730 = vunpack.c.l.bf16 %v726
        %v731 = vunpack.c.h.bf16 %v726
        %v732 = vunpack.c.l.bf16 %v727
        %738 = vrot.lane.b32.xlu0 %v728, 90
        %v739 = vpop.permute.xlu0 %738
        %740 = vrot.lane.b32.xlu0 %v729, 90
        %v741 = vpop.permute.xlu0 %740
        %742 = vrot.lane.b32.xlu0 %v730, 90
        %v743 = vpop.permute.xlu0 %742
        %744 = vrot.lane.b32.xlu0 %v731, 90
        %v745 = vpop.permute.xlu0 %744
        %746 = vrot.lane.b32.xlu0 %v732, 90
        %v747 = vpop.permute.xlu0 %746
        %vm748 = vcmask 736256
        %v749 = vsel %vm748, %v739, %v741
        %v750 = vsel %vm748, %v741, %v743
        %v751 = vsel %vm748, %v743, %v745
        %v752 = vsel %vm748, %v745, %v747
        %757 = vst [vmem:[#allocation3 + $0xc0] sm:$0xff] %v749
        %758 = vst [vmem:[#allocation3 + $0xc8] sm:$0xff] %v750
        %759 = vst [vmem:[#allocation3 + $0xd0] sm:$0xff] %v751
        %760 = vst [vmem:[#allocation3 + $0xd8] sm:$0xff] %v752
        %v761 = vld [vmem:[#allocation2 + $0x4] sm:$0xff]
        %v762 = vld [vmem:[#allocation2 + $0xc] sm:$0xff]
        %v763 = vld [vmem:[#allocation2 + $0x14] sm:$0xf]
        %v764 = vunpack.c.l.bf16 %v761
        %v765 = vunpack.c.h.bf16 %v761
        %v766 = vunpack.c.l.bf16 %v762
        %v767 = vunpack.c.h.bf16 %v762
        %v768 = vunpack.c.l.bf16 %v763
        %774 = vrot.lane.b32.xlu0 %v764, 88
        %v775 = vpop.permute.xlu0 %774
        %776 = vrot.lane.b32.xlu0 %v765, 88
        %v777 = vpop.permute.xlu0 %776
        %778 = vrot.lane.b32.xlu0 %v766, 88
        %v779 = vpop.permute.xlu0 %778
        %780 = vrot.lane.b32.xlu0 %v767, 88
        %v781 = vpop.permute.xlu0 %780
        %782 = vrot.lane.b32.xlu0 %v768, 88
        %v783 = vpop.permute.xlu0 %782
        %vm784 = vcmask 719872
        %v785 = vsel %vm784, %v775, %v777
        %v786 = vsel %vm784, %v777, %v779
        %v787 = vsel %vm784, %v779, %v781
        %v788 = vsel %vm784, %v781, %v783
        %793 = vst [vmem:[#allocation3 + $0xe0] sm:$0xff] %v785
        %794 = vst [vmem:[#allocation3 + $0xe8] sm:$0xff] %v786
        %795 = vst [vmem:[#allocation3 + $0xf0] sm:$0xff] %v787
        %796 = vst [vmem:[#allocation3 + $0xf8] sm:$0xff] %v788
        %v797 = vld [vmem:[#allocation2 + $0x4] sm:$0xff]
        %v798 = vld [vmem:[#allocation2 + $0xc] sm:$0xff]
        %v799 = vld [vmem:[#allocation2 + $0x14] sm:$0xf]
        %v800 = vunpack.c.l.bf16 %v797
        %v801 = vunpack.c.h.bf16 %v797
        %v802 = vunpack.c.l.bf16 %v798
        %v803 = vunpack.c.h.bf16 %v798
        %v804 = vunpack.c.l.bf16 %v799
        %810 = vrot.lane.b32.xlu0 %v800, 86
        %v811 = vpop.permute.xlu0 %810
        %812 = vrot.lane.b32.xlu0 %v801, 86
        %v813 = vpop.permute.xlu0 %812
        %814 = vrot.lane.b32.xlu0 %v802, 86
        %v815 = vpop.permute.xlu0 %814
        %816 = vrot.lane.b32.xlu0 %v803, 86
        %v817 = vpop.permute.xlu0 %816
        %818 = vrot.lane.b32.xlu0 %v804, 86
        %v819 = vpop.permute.xlu0 %818
        %vm820 = vcmask 703488
        %v821 = vsel %vm820, %v811, %v813
        %v822 = vsel %vm820, %v813, %v815
        %v823 = vsel %vm820, %v815, %v817
        %v824 = vsel %vm820, %v817, %v819
        %829 = vst [vmem:[#allocation3 + $0x100] sm:$0xff] %v821
        %830 = vst [vmem:[#allocation3 + $0x108] sm:$0xff] %v822
        %831 = vst [vmem:[#allocation3 + $0x110] sm:$0xff] %v823
        %832 = vst [vmem:[#allocation3 + $0x118] sm:$0xff] %v824
        %v833 = vld [vmem:[#allocation3] sm:$0xff]
        %v834 = vld [vmem:[#allocation3 + $0x8] sm:$0xff]
        %v835 = vld [vmem:[#allocation3 + $0x10] sm:$0xff]
        %v836 = vld [vmem:[#allocation3 + $0x18] sm:$0xff]
        %v837 = vld [vmem:[#allocation3 + $0x20] sm:$0xff]
        %v838 = vld [vmem:[#allocation3 + $0x28] sm:$0xff]
        %v839 = vld [vmem:[#allocation3 + $0x30] sm:$0xff]
        %v840 = vld [vmem:[#allocation3 + $0x38] sm:$0xff]
        %v841 = vld [vmem:[#allocation3 + $0x40] sm:$0xff]
        %v842 = vld [vmem:[#allocation3 + $0x48] sm:$0xff]
        %v843 = vld [vmem:[#allocation3 + $0x50] sm:$0xff]
        %v844 = vld [vmem:[#allocation3 + $0x58] sm:$0xff]
        %v845 = vld [vmem:[#allocation3 + $0x60] sm:$0xff]
        %v846 = vld [vmem:[#allocation3 + $0x68] sm:$0xff]
        %v847 = vld [vmem:[#allocation3 + $0x70] sm:$0xff]
        %v848 = vld [vmem:[#allocation3 + $0x78] sm:$0xff]
        %v849 = vld [vmem:[#allocation3 + $0x80] sm:$0xff]
        %v850 = vld [vmem:[#allocation3 + $0x88] sm:$0xff]
        %v851 = vld [vmem:[#allocation3 + $0x90] sm:$0xff]
        %v852 = vld [vmem:[#allocation3 + $0x98] sm:$0xff]
        %v853 = vld [vmem:[#allocation3 + $0xa0] sm:$0xff]
        %v854 = vld [vmem:[#allocation3 + $0xa8] sm:$0xff]
        %v855 = vld [vmem:[#allocation3 + $0xb0] sm:$0xff]
        %v856 = vld [vmem:[#allocation3 + $0xb8] sm:$0xff]
        %v857 = vld [vmem:[#allocation3 + $0xc0] sm:$0xff]
        %v858 = vld [vmem:[#allocation3 + $0xc8] sm:$0xff]
        %v859 = vld [vmem:[#allocation3 + $0xd0] sm:$0xff]
        %v860 = vld [vmem:[#allocation3 + $0xd8] sm:$0xff]
        %v861 = vld [vmem:[#allocation3 + $0xe0] sm:$0xff]
        %v862 = vld [vmem:[#allocation3 + $0xe8] sm:$0xff]
        %v863 = vld [vmem:[#allocation3 + $0xf0] sm:$0xff]
        %v864 = vld [vmem:[#allocation3 + $0xf8] sm:$0xff]
        %v865 = vld [vmem:[#allocation3 + $0x100] sm:$0xff]
        %v866 = vld [vmem:[#allocation3 + $0x108] sm:$0xff]
        %v867 = vld [vmem:[#allocation3 + $0x110] sm:$0xff]
        %v868 = vld [vmem:[#allocation3 + $0x118] sm:$0xff]
        %v869 = vpack.c.bf16 %v837, %v833
        %v870 = vpack.c.bf16 %v838, %v834
        %v871 = vpack.c.bf16 %v839, %v835
        %v872 = vpack.c.bf16 %v840, %v836
        %v873 = vpack.c.bf16 %v845, %v841
        %v874 = vpack.c.bf16 %v846, %v842
        %v875 = vpack.c.bf16 %v847, %v843
        %v876 = vpack.c.bf16 %v848, %v844
        %v877 = vpack.c.bf16 %v853, %v849
        %v878 = vpack.c.bf16 %v854, %v850
        %v879 = vpack.c.bf16 %v855, %v851
        %v880 = vpack.c.bf16 %v856, %v852
        %v881 = vpack.c.bf16 %v861, %v857
        %v882 = vpack.c.bf16 %v862, %v858
        %v883 = vpack.c.bf16 %v863, %v859
        %v884 = vpack.c.bf16 %v864, %v860
        %v885 = vpack.c.bf16 %v865, %v865
        %v886 = vpack.c.bf16 %v866, %v866
        %v887 = vpack.c.bf16 %v867, %v867
        %v888 = vpack.c.bf16 %v868, %v868
        %v889 = vld [vmem:[#allocation7] sm:$0xf]
        %v890 = vld [vmem:[%s3] sm:$0xff]
        %892 = vset.pattern.permute.xlu0 0
        %893 = vperm.xlu0 %892, %v890
        %v894 = vpop.permute.xlu0 %893
        %vm896 = vcmask 588800
        %v898 = vsel %vm896, %v889, 0
        %vm900 = vcmask 1043456
        %v902 = vsel %vm900, %v885, 0
        %v905 = vsel %vm900, %v886, 0
        %v908 = vsel %vm900, %v887, 0
        %v911 = vsel %vm900, %v888, 0
        %913 = vmatprep.subr.bf16.mxu0 0
        %914 = vmatpush1.bf16.msra.mxu0 0
        %915 = vmatprep.subr.bf16.mxu0 0
        %916 = vmatpush1.bf16.msra.mxu0 0
        %917 = vmatprep.subr.bf16.mxu0 0
        %918 = vmatpush1.bf16.msra.mxu0 0
        %919 = vmatprep.subr.bf16.mxu0 %v905
        %920 = vmatpush1.bf16.msra.mxu0 %v902
        %921 = vmatprep.subr.bf16.mxu0 %v882
        %922 = vmatpush1.bf16.msra.mxu0 %v881
        %923 = vmatprep.subr.bf16.mxu0 %v878
        %924 = vmatpush1.bf16.msra.mxu0 %v877
        %925 = vmatprep.subr.bf16.mxu0 %v874
        %926 = vmatpush1.bf16.msra.mxu0 %v873
        %927 = vmatprep.subr.bf16.mxu0 %v870
        %928 = vmatpush1.bf16.msra.mxu0 %v869
        %929 = vmatprep.subr.bf16.mxu0 0
        %930 = vmatpush2.bf16.msra.mxu0 0
        %931 = vmatprep.subr.bf16.mxu0 0
        %932 = vmatpush2.bf16.msra.mxu0 0
        %933 = vmatprep.subr.bf16.mxu0 0
        %934 = vmatpush2.bf16.msra.mxu0 0
        %935 = vmatprep.subr.bf16.mxu0 0
        %936 = vmatpush2.bf16.msra.mxu0 0
        %937 = vmatprep.subr.bf16.mxu0 0
        %938 = vmatpush2.bf16.msra.mxu0 0
        %939 = vmatprep.subr.bf16.mxu0 0
        %940 = vmatpush2.bf16.msra.mxu0 0
        %941 = vmatprep.subr.bf16.mxu0 0
        %942 = vmatpush2.bf16.msra.mxu0 0
        %943 = vmatprep.subr.bf16.mxu0 0
        %944 = vmatpush2.bf16.msra.mxu0 0
        %945 = vmatprep.mubr.bf16.mxu0 0
        %946 = vmatmul.mubr.bf16.gmra.mxu0 %v898
        %v947 = vpop.f32.mrf.mxu0
        %v948 = vadd.f32 %v894, %v947
        %v949 = vpop.f32.mrf.mxu0
        %v950 = vadd.f32 %v894, %v949
        %v951 = vpop.f32.mrf.mxu0
        %v952 = vpop.f32.mrf.mxu0
        %953 = vdwg.mxu0
        %954 = vmatprep.subr.bf16.mxu0 0
        %955 = vmatpush1.bf16.msra.mxu0 0
        %956 = vmatprep.subr.bf16.mxu0 0
        %957 = vmatpush1.bf16.msra.mxu0 0
        %958 = vmatprep.subr.bf16.mxu0 0
        %959 = vmatpush1.bf16.msra.mxu0 0
        %960 = vmatprep.subr.bf16.mxu0 %v911
        %961 = vmatpush1.bf16.msra.mxu0 %v908
        %962 = vmatprep.subr.bf16.mxu0 %v884
        %963 = vmatpush1.bf16.msra.mxu0 %v883
        %964 = vmatprep.subr.bf16.mxu0 %v880
        %965 = vmatpush1.bf16.msra.mxu0 %v879
        %966 = vmatprep.subr.bf16.mxu0 %v876
        %967 = vmatpush1.bf16.msra.mxu0 %v875
        %968 = vmatprep.subr.bf16.mxu0 %v872
        %969 = vmatpush1.bf16.msra.mxu0 %v871
        %970 = vmatprep.subr.bf16.mxu0 0
        %971 = vmatpush2.bf16.msra.mxu0 0
        %972 = vmatprep.subr.bf16.mxu0 0
        %973 = vmatpush2.bf16.msra.mxu0 0
        %974 = vmatprep.subr.bf16.mxu0 0
        %975 = vmatpush2.bf16.msra.mxu0 0
        %976 = vmatprep.subr.bf16.mxu0 0
        %977 = vmatpush2.bf16.msra.mxu0 0
        %978 = vmatprep.subr.bf16.mxu0 0
        %979 = vmatpush2.bf16.msra.mxu0 0
        %980 = vmatprep.subr.bf16.mxu0 0
        %981 = vmatpush2.bf16.msra.mxu0 0
        %982 = vmatprep.subr.bf16.mxu0 0
        %983 = vmatpush2.bf16.msra.mxu0 0
        %984 = vmatprep.subr.bf16.mxu0 0
        %985 = vmatpush2.bf16.msra.mxu0 0
        %986 = vmatprep.mubr.bf16.mxu0 0
        %987 = vmatmul.mubr.bf16.gmra.mxu0 %v898
        %v988 = vpop.f32.mrf.mxu0
        %v989 = vadd.f32 %v894, %v988
        %v990 = vpop.f32.mrf.mxu0
        %v991 = vadd.f32 %v894, %v990
        %v992 = vpop.f32.mrf.mxu0
        %v993 = vpop.f32.mrf.mxu0
        %994 = vdwg.mxu0
        %v995 = vmul.f32 %v948, %v496
        %v996 = vmul.f32 %v950, %v500
        %v997 = vmul.f32 %v989, %v504
        %v998 = vmul.f32 %v991, %v508
        %v999 = vpack.c.bf16 %v995, %v995
        %v1000 = vpack.c.bf16 %v996, %v996
        %v1001 = vpack.c.bf16 %v997, %v997
        %v1002 = vpack.c.bf16 %v998, %v998
        %v1007 = vunpack.c.l.b16 %v999
        %v1008 = vunpack.c.l.b16 %v1000
        %v1009 = vunpack.c.l.b16 %v1001
        %v1010 = vunpack.c.l.b16 %v1002
        %v1011 = vpack.c.b16 %v1008, %v1007
        %v1012 = vpack.c.b16 %v1010, %v1009
        %1015 = vst [vmem:[#allocation2 + $0x4] sm:$0xff] %v1011
        %1016 = vst [vmem:[#allocation2 + $0xc] sm:$0xff] %v1012
        %v1017 = vld [vmem:[#allocation2] sm:$0xff]
        %v1018 = vld [vmem:[#allocation2 + $0x8] sm:$0xff]
        %v1019 = vld [vmem:[#allocation2 + $0x10] sm:$0xf]
        %v1020 = vunpack.c.l.bf16 %v1017
        %v1021 = vunpack.c.h.bf16 %v1017
        %v1022 = vunpack.c.l.bf16 %v1018
        %v1023 = vunpack.c.h.bf16 %v1018
        %v1024 = vunpack.c.l.bf16 %v1019
        %1030 = vrot.lane.b32.xlu0 %v1020, 42
        %v1031 = vpop.permute.xlu0 %1030
        %1032 = vrot.lane.b32.xlu0 %v1021, 42
        %v1033 = vpop.permute.xlu0 %1032
        %1034 = vrot.lane.b32.xlu0 %v1022, 42
        %v1035 = vpop.permute.xlu0 %1034
        %1036 = vrot.lane.b32.xlu0 %v1023, 42
        %v1037 = vpop.permute.xlu0 %1036
        %1038 = vrot.lane.b32.xlu0 %v1024, 42
        %v1039 = vpop.permute.xlu0 %1038
        %v1040 = vsel %vm558, %v1031, %v1033
        %v1041 = vsel %vm558, %v1033, %v1035
        %v1042 = vsel %vm558, %v1035, %v1037
        %v1043 = vsel %vm558, %v1037, %v1039
        %1048 = vst [vmem:[#allocation3] sm:$0xff] %v1040
        %1049 = vst [vmem:[#allocation3 + $0x8] sm:$0xff] %v1041
        %1050 = vst [vmem:[#allocation3 + $0x10] sm:$0xff] %v1042
        %1051 = vst [vmem:[#allocation3 + $0x18] sm:$0xff] %v1043
        %v1052 = vld [vmem:[#allocation2] sm:$0xff]
        %v1053 = vld [vmem:[#allocation2 + $0x8] sm:$0xff]
        %v1054 = vld [vmem:[#allocation2 + $0x10] sm:$0xf]
        %v1055 = vunpack.c.l.bf16 %v1052
        %v1056 = vunpack.c.h.bf16 %v1052
        %v1057 = vunpack.c.l.bf16 %v1053
        %v1058 = vunpack.c.h.bf16 %v1053
        %v1059 = vunpack.c.l.bf16 %v1054
        %1065 = vrot.lane.b32.xlu0 %v1055, 40
        %v1066 = vpop.permute.xlu0 %1065
        %1067 = vrot.lane.b32.xlu0 %v1056, 40
        %v1068 = vpop.permute.xlu0 %1067
        %1069 = vrot.lane.b32.xlu0 %v1057, 40
        %v1070 = vpop.permute.xlu0 %1069
        %1071 = vrot.lane.b32.xlu0 %v1058, 40
        %v1072 = vpop.permute.xlu0 %1071
        %1073 = vrot.lane.b32.xlu0 %v1059, 40
        %v1074 = vpop.permute.xlu0 %1073
        %v1075 = vsel %vm594, %v1066, %v1068
        %v1076 = vsel %vm594, %v1068, %v1070
        %v1077 = vsel %vm594, %v1070, %v1072
        %v1078 = vsel %vm594, %v1072, %v1074
        %1083 = vst [vmem:[#allocation3 + $0x20] sm:$0xff] %v1075
        %1084 = vst [vmem:[#allocation3 + $0x28] sm:$0xff] %v1076
        %1085 = vst [vmem:[#allocation3 + $0x30] sm:$0xff] %v1077
        %1086 = vst [vmem:[#allocation3 + $0x38] sm:$0xff] %v1078
        %v1087 = vld [vmem:[#allocation2] sm:$0xff]
        %v1088 = vld [vmem:[#allocation2 + $0x8] sm:$0xff]
        %v1089 = vld [vmem:[#allocation2 + $0x10] sm:$0xf]
        %v1090 = vunpack.c.l.bf16 %v1087
        %v1091 = vunpack.c.h.bf16 %v1087
        %v1092 = vunpack.c.l.bf16 %v1088
        %v1093 = vunpack.c.h.bf16 %v1088
        %v1094 = vunpack.c.l.bf16 %v1089
        %1100 = vrot.lane.b32.xlu0 %v1090, 38
        %v1101 = vpop.permute.xlu0 %1100
        %1102 = vrot.lane.b32.xlu0 %v1091, 38
        %v1103 = vpop.permute.xlu0 %1102
        %1104 = vrot.lane.b32.xlu0 %v1092, 38
        %v1105 = vpop.permute.xlu0 %1104
        %1106 = vrot.lane.b32.xlu0 %v1093, 38
        %v1107 = vpop.permute.xlu0 %1106
        %1108 = vrot.lane.b32.xlu0 %v1094, 38
        %v1109 = vpop.permute.xlu0 %1108
        %v1110 = vsel %vm630, %v1101, %v1103
        %v1111 = vsel %vm630, %v1103, %v1105
        %v1112 = vsel %vm630, %v1105, %v1107
        %v1113 = vsel %vm630, %v1107, %v1109
        %1118 = vst [vmem:[#allocation3 + $0x40] sm:$0xff] %v1110
        %1119 = vst [vmem:[#allocation3 + $0x48] sm:$0xff] %v1111
        %1120 = vst [vmem:[#allocation3 + $0x50] sm:$0xff] %v1112
        %1121 = vst [vmem:[#allocation3 + $0x58] sm:$0xff] %v1113
        %v1122 = vld [vmem:[#allocation2] sm:$0xff]
        %v1123 = vld [vmem:[#allocation2 + $0x8] sm:$0xff]
        %v1124 = vld [vmem:[#allocation2 + $0x10] sm:$0xf]
        %v1125 = vunpack.c.l.bf16 %v1122
        %v1126 = vunpack.c.h.bf16 %v1122
        %v1127 = vunpack.c.l.bf16 %v1123
        %v1128 = vunpack.c.h.bf16 %v1123
        %v1129 = vunpack.c.l.bf16 %v1124
        %1135 = vrot.lane.b32.xlu0 %v1125, 2
        %v1136 = vpop.permute.xlu0 %1135
        %1137 = vrot.lane.b32.xlu0 %v1126, 2
        %v1138 = vpop.permute.xlu0 %1137
        %1139 = vrot.lane.b32.xlu0 %v1127, 2
        %v1140 = vpop.permute.xlu0 %1139
        %1141 = vrot.lane.b32.xlu0 %v1128, 2
        %v1142 = vpop.permute.xlu0 %1141
        %1143 = vrot.lane.b32.xlu0 %v1129, 2
        %v1144 = vpop.permute.xlu0 %1143
        %v1145 = vsel %vm666, %v1136, %v1138
        %v1146 = vsel %vm666, %v1138, %v1140
        %v1147 = vsel %vm666, %v1140, %v1142
        %v1148 = vsel %vm666, %v1142, %v1144
        %1153 = vst [vmem:[#allocation3 + $0x60] sm:$0xff] %v1145
        %1154 = vst [vmem:[#allocation3 + $0x68] sm:$0xff] %v1146
        %1155 = vst [vmem:[#allocation3 + $0x70] sm:$0xff] %v1147
        %1156 = vst [vmem:[#allocation3 + $0x78] sm:$0xff] %v1148
        %v1157 = vld [vmem:[#allocation2 + $0x4] sm:$0xff]
        %v1158 = vld [vmem:[#allocation2 + $0xc] sm:$0xff]
        %v1159 = vunpack.c.l.bf16 %v1157
        %v1160 = vunpack.c.h.bf16 %v1157
        %v1161 = vunpack.c.l.bf16 %v1158
        %v1162 = vunpack.c.h.bf16 %v1158
        %1163 = vst [vmem:[#allocation3 + $0x80] sm:$0xff] %v1159
        %1164 = vst [vmem:[#allocation3 + $0x88] sm:$0xff] %v1160
        %1165 = vst [vmem:[#allocation3 + $0x90] sm:$0xff] %v1161
        %1166 = vst [vmem:[#allocation3 + $0x98] sm:$0xff] %v1162
        %v1167 = vld [vmem:[#allocation2 + $0x4] sm:$0xff]
        %v1168 = vld [vmem:[#allocation2 + $0xc] sm:$0xff]
        %v1169 = vld [vmem:[#allocation2 + $0x14] sm:$0xf]
        %v1170 = vunpack.c.l.bf16 %v1167
        %v1171 = vunpack.c.h.bf16 %v1167
        %v1172 = vunpack.c.l.bf16 %v1168
        %v1173 = vunpack.c.h.bf16 %v1168
        %v1174 = vunpack.c.l.bf16 %v1169
        %1180 = vrot.lane.b32.xlu0 %v1170, 126
        %v1181 = vpop.permute.xlu0 %1180
        %1182 = vrot.lane.b32.xlu0 %v1171, 126
        %v1183 = vpop.permute.xlu0 %1182
        %1184 = vrot.lane.b32.xlu0 %v1172, 126
        %v1185 = vpop.permute.xlu0 %1184
        %1186 = vrot.lane.b32.xlu0 %v1173, 126
        %v1187 = vpop.permute.xlu0 %1186
        %1188 = vrot.lane.b32.xlu0 %v1174, 126
        %v1189 = vpop.permute.xlu0 %1188
        %v1190 = vsel %vm712, %v1181, %v1183
        %v1191 = vsel %vm712, %v1183, %v1185
        %v1192 = vsel %vm712, %v1185, %v1187
        %v1193 = vsel %vm712, %v1187, %v1189
        %1198 = vst [vmem:[#allocation3 + $0xa0] sm:$0xff] %v1190
        %1199 = vst [vmem:[#allocation3 + $0xa8] sm:$0xff] %v1191
        %1200 = vst [vmem:[#allocation3 + $0xb0] sm:$0xff] %v1192
        %1201 = vst [vmem:[#allocation3 + $0xb8] sm:$0xff] %v1193
        %v1202 = vld [vmem:[#allocation2 + $0x4] sm:$0xff]
        %v1203 = vld [vmem:[#allocation2 + $0xc] sm:$0xff]
        %v1204 = vld [vmem:[#allocation2 + $0x14] sm:$0xf]
        %v1205 = vunpack.c.l.bf16 %v1202
        %v1206 = vunpack.c.h.bf16 %v1202
        %v1207 = vunpack.c.l.bf16 %v1203
        %v1208 = vunpack.c.h.bf16 %v1203
        %v1209 = vunpack.c.l.bf16 %v1204
        %1215 = vrot.lane.b32.xlu0 %v1205, 90
        %v1216 = vpop.permute.xlu0 %1215
        %1217 = vrot.lane.b32.xlu0 %v1206, 90
        %v1218 = vpop.permute.xlu0 %1217
        %1219 = vrot.lane.b32.xlu0 %v1207, 90
        %v1220 = vpop.permute.xlu0 %1219
        %1221 = vrot.lane.b32.xlu0 %v1208, 90
        %v1222 = vpop.permute.xlu0 %1221
        %1223 = vrot.lane.b32.xlu0 %v1209, 90
        %v1224 = vpop.permute.xlu0 %1223
        %v1225 = vsel %vm748, %v1216, %v1218
        %v1226 = vsel %vm748, %v1218, %v1220
        %v1227 = vsel %vm748, %v1220, %v1222
        %v1228 = vsel %vm748, %v1222, %v1224
        %1233 = vst [vmem:[#allocation3 + $0xc0] sm:$0xff] %v1225
        %1234 = vst [vmem:[#allocation3 + $0xc8] sm:$0xff] %v1226
        %1235 = vst [vmem:[#allocation3 + $0xd0] sm:$0xff] %v1227
        %1236 = vst [vmem:[#allocation3 + $0xd8] sm:$0xff] %v1228
        %v1237 = vld [vmem:[#allocation2 + $0x4] sm:$0xff]
        %v1238 = vld [vmem:[#allocation2 + $0xc] sm:$0xff]
        %v1239 = vld [vmem:[#allocation2 + $0x14] sm:$0xf]
        %v1240 = vunpack.c.l.bf16 %v1237
        %v1241 = vunpack.c.h.bf16 %v1237
        %v1242 = vunpack.c.l.bf16 %v1238
        %v1243 = vunpack.c.h.bf16 %v1238
        %v1244 = vunpack.c.l.bf16 %v1239
        %1250 = vrot.lane.b32.xlu0 %v1240, 88
        %v1251 = vpop.permute.xlu0 %1250
        %1252 = vrot.lane.b32.xlu0 %v1241, 88
        %v1253 = vpop.permute.xlu0 %1252
        %1254 = vrot.lane.b32.xlu0 %v1242, 88
        %v1255 = vpop.permute.xlu0 %1254
        %1256 = vrot.lane.b32.xlu0 %v1243, 88
        %v1257 = vpop.permute.xlu0 %1256
        %1258 = vrot.lane.b32.xlu0 %v1244, 88
        %v1259 = vpop.permute.xlu0 %1258
        %v1260 = vsel %vm784, %v1251, %v1253
        %v1261 = vsel %vm784, %v1253, %v1255
        %v1262 = vsel %vm784, %v1255, %v1257
        %v1263 = vsel %vm784, %v1257, %v1259
        %1268 = vst [vmem:[#allocation3 + $0xe0] sm:$0xff] %v1260
        %1269 = vst [vmem:[#allocation3 + $0xe8] sm:$0xff] %v1261
        %1270 = vst [vmem:[#allocation3 + $0xf0] sm:$0xff] %v1262
        %1271 = vst [vmem:[#allocation3 + $0xf8] sm:$0xff] %v1263
        %v1272 = vld [vmem:[#allocation2 + $0x4] sm:$0xff]
        %v1273 = vld [vmem:[#allocation2 + $0xc] sm:$0xff]
        %v1274 = vld [vmem:[#allocation2 + $0x14] sm:$0xf]
        %v1275 = vunpack.c.l.bf16 %v1272
        %v1276 = vunpack.c.h.bf16 %v1272
        %v1277 = vunpack.c.l.bf16 %v1273
        %v1278 = vunpack.c.h.bf16 %v1273
        %v1279 = vunpack.c.l.bf16 %v1274
        %1285 = vrot.lane.b32.xlu0 %v1275, 86
        %v1286 = vpop.permute.xlu0 %1285
        %1287 = vrot.lane.b32.xlu0 %v1276, 86
        %v1288 = vpop.permute.xlu0 %1287
        %1289 = vrot.lane.b32.xlu0 %v1277, 86
        %v1290 = vpop.permute.xlu0 %1289
        %1291 = vrot.lane.b32.xlu0 %v1278, 86
        %v1292 = vpop.permute.xlu0 %1291
        %1293 = vrot.lane.b32.xlu0 %v1279, 86
        %v1294 = vpop.permute.xlu0 %1293
        %v1295 = vsel %vm820, %v1286, %v1288
        %v1296 = vsel %vm820, %v1288, %v1290
        %v1297 = vsel %vm820, %v1290, %v1292
        %v1298 = vsel %vm820, %v1292, %v1294
        %1303 = vst [vmem:[#allocation3 + $0x100] sm:$0xff] %v1295
        %1304 = vst [vmem:[#allocation3 + $0x108] sm:$0xff] %v1296
        %1305 = vst [vmem:[#allocation3 + $0x110] sm:$0xff] %v1297
        %1306 = vst [vmem:[#allocation3 + $0x118] sm:$0xff] %v1298
        %v1307 = vld [vmem:[#allocation3] sm:$0xff]
        %v1308 = vld [vmem:[#allocation3 + $0x8] sm:$0xff]
        %v1309 = vld [vmem:[#allocation3 + $0x10] sm:$0xff]
        %v1310 = vld [vmem:[#allocation3 + $0x18] sm:$0xff]
        %v1311 = vld [vmem:[#allocation3 + $0x20] sm:$0xff]
        %v1312 = vld [vmem:[#allocation3 + $0x28] sm:$0xff]
        %v1313 = vld [vmem:[#allocation3 + $0x30] sm:$0xff]
        %v1314 = vld [vmem:[#allocation3 + $0x38] sm:$0xff]
        %v1315 = vld [vmem:[#allocation3 + $0x40] sm:$0xff]
        %v1316 = vld [vmem:[#allocation3 + $0x48] sm:$0xff]
        %v1317 = vld [vmem:[#allocation3 + $0x50] sm:$0xff]
        %v1318 = vld [vmem:[#allocation3 + $0x58] sm:$0xff]
        %v1319 = vld [vmem:[#allocation3 + $0x60] sm:$0xff]
        %v1320 = vld [vmem:[#allocation3 + $0x68] sm:$0xff]
        %v1321 = vld [vmem:[#allocation3 + $0x70] sm:$0xff]
        %v1322 = vld [vmem:[#allocation3 + $0x78] sm:$0xff]
        %v1323 = vld [vmem:[#allocation3 + $0x80] sm:$0xff]
        %v1324 = vld [vmem:[#allocation3 + $0x88] sm:$0xff]
        %v1325 = vld [vmem:[#allocation3 + $0x90] sm:$0xff]
        %v1326 = vld [vmem:[#allocation3 + $0x98] sm:$0xff]
        %v1327 = vld [vmem:[#allocation3 + $0xa0] sm:$0xff]
        %v1328 = vld [vmem:[#allocation3 + $0xa8] sm:$0xff]
        %v1329 = vld [vmem:[#allocation3 + $0xb0] sm:$0xff]
        %v1330 = vld [vmem:[#allocation3 + $0xb8] sm:$0xff]
        %v1331 = vld [vmem:[#allocation3 + $0xc0] sm:$0xff]
        %v1332 = vld [vmem:[#allocation3 + $0xc8] sm:$0xff]
        %v1333 = vld [vmem:[#allocation3 + $0xd0] sm:$0xff]
        %v1334 = vld [vmem:[#allocation3 + $0xd8] sm:$0xff]
        %v1335 = vld [vmem:[#allocation3 + $0xe0] sm:$0xff]
        %v1336 = vld [vmem:[#allocation3 + $0xe8] sm:$0xff]
        %v1337 = vld [vmem:[#allocation3 + $0xf0] sm:$0xff]
        %v1338 = vld [vmem:[#allocation3 + $0xf8] sm:$0xff]
        %v1339 = vld [vmem:[#allocation3 + $0x100] sm:$0xff]
        %v1340 = vld [vmem:[#allocation3 + $0x108] sm:$0xff]
        %v1341 = vld [vmem:[#allocation3 + $0x110] sm:$0xff]
        %v1342 = vld [vmem:[#allocation3 + $0x118] sm:$0xff]
        %v1343 = vpack.c.bf16 %v1311, %v1307
        %v1344 = vpack.c.bf16 %v1312, %v1308
        %v1345 = vpack.c.bf16 %v1313, %v1309
        %v1346 = vpack.c.bf16 %v1314, %v1310
        %v1347 = vpack.c.bf16 %v1319, %v1315
        %v1348 = vpack.c.bf16 %v1320, %v1316
        %v1349 = vpack.c.bf16 %v1321, %v1317
        %v1350 = vpack.c.bf16 %v1322, %v1318
        %v1351 = vpack.c.bf16 %v1327, %v1323
        %v1352 = vpack.c.bf16 %v1328, %v1324
        %v1353 = vpack.c.bf16 %v1329, %v1325
        %v1354 = vpack.c.bf16 %v1330, %v1326
        %v1355 = vpack.c.bf16 %v1335, %v1331
        %v1356 = vpack.c.bf16 %v1336, %v1332
        %v1357 = vpack.c.bf16 %v1337, %v1333
        %v1358 = vpack.c.bf16 %v1338, %v1334
        %v1359 = vpack.c.bf16 %v1339, %v1339
        %v1360 = vpack.c.bf16 %v1340, %v1340
        %v1361 = vpack.c.bf16 %v1341, %v1341
        %v1362 = vpack.c.bf16 %v1342, %v1342
        %v1363 = vld [vmem:[%s4] sm:$0xf]
        %v1364 = vld [vmem:[%s5] sm:$0xff]
        %1366 = vset.pattern.permute.xlu0 0
        %1367 = vperm.xlu0 %1366, %v1364
        %v1368 = vpop.permute.xlu0 %1367
        %v1371 = vsel %vm896, %v1363, 0
        %v1374 = vsel %vm900, %v1359, 0
        %v1377 = vsel %vm900, %v1360, 0
        %v1380 = vsel %vm900, %v1361, 0
        %v1383 = vsel %vm900, %v1362, 0
        %1385 = vmatprep.subr.bf16.mxu0 0
        %1386 = vmatpush1.bf16.msra.mxu0 0
        %1387 = vmatprep.subr.bf16.mxu0 0
        %1388 = vmatpush1.bf16.msra.mxu0 0
        %1389 = vmatprep.subr.bf16.mxu0 0
        %1390 = vmatpush1.bf16.msra.mxu0 0
        %1391 = vmatprep.subr.bf16.mxu0 %v1377
        %1392 = vmatpush1.bf16.msra.mxu0 %v1374
        %1393 = vmatprep.subr.bf16.mxu0 %v1356
        %1394 = vmatpush1.bf16.msra.mxu0 %v1355
        %1395 = vmatprep.subr.bf16.mxu0 %v1352
        %1396 = vmatpush1.bf16.msra.mxu0 %v1351
        %1397 = vmatprep.subr.bf16.mxu0 %v1348
        %1398 = vmatpush1.bf16.msra.mxu0 %v1347
        %1399 = vmatprep.subr.bf16.mxu0 %v1344
        %1400 = vmatpush1.bf16.msra.mxu0 %v1343
        %1401 = vmatprep.subr.bf16.mxu0 0
        %1402 = vmatpush2.bf16.msra.mxu0 0
        %1403 = vmatprep.subr.bf16.mxu0 0
        %1404 = vmatpush2.bf16.msra.mxu0 0
        %1405 = vmatprep.subr.bf16.mxu0 0
        %1406 = vmatpush2.bf16.msra.mxu0 0
        %1407 = vmatprep.subr.bf16.mxu0 0
        %1408 = vmatpush2.bf16.msra.mxu0 0
        %1409 = vmatprep.subr.bf16.mxu0 0
        %1410 = vmatpush2.bf16.msra.mxu0 0
        %1411 = vmatprep.subr.bf16.mxu0 0
        %1412 = vmatpush2.bf16.msra.mxu0 0
        %1413 = vmatprep.subr.bf16.mxu0 0
        %1414 = vmatpush2.bf16.msra.mxu0 0
        %1415 = vmatprep.subr.bf16.mxu0 0
        %1416 = vmatpush2.bf16.msra.mxu0 0
        %1417 = vmatprep.mubr.bf16.mxu0 0
        %1418 = vmatmul.mubr.bf16.gmra.mxu0 %v1371
        %v1419 = vpop.f32.mrf.mxu0
        %v1420 = vadd.f32 %v1368, %v1419
        %v1421 = vpop.f32.mrf.mxu0
        %v1422 = vadd.f32 %v1368, %v1421
        %v1423 = vpop.f32.mrf.mxu0
        %v1424 = vpop.f32.mrf.mxu0
        %1425 = vdwg.mxu0
        %1426 = vmatprep.subr.bf16.mxu0 0
        %1427 = vmatpush1.bf16.msra.mxu0 0
        %1428 = vmatprep.subr.bf16.mxu0 0
        %1429 = vmatpush1.bf16.msra.mxu0 0
        %1430 = vmatprep.subr.bf16.mxu0 0
        %1431 = vmatpush1.bf16.msra.mxu0 0
        %1432 = vmatprep.subr.bf16.mxu0 %v1383
        %1433 = vmatpush1.bf16.msra.mxu0 %v1380
        %1434 = vmatprep.subr.bf16.mxu0 %v1358
        %1435 = vmatpush1.bf16.msra.mxu0 %v1357
        %1436 = vmatprep.subr.bf16.mxu0 %v1354
        %1437 = vmatpush1.bf16.msra.mxu0 %v1353
        %1438 = vmatprep.subr.bf16.mxu0 %v1350
        %1439 = vmatpush1.bf16.msra.mxu0 %v1349
        %1440 = vmatprep.subr.bf16.mxu0 %v1346
        %1441 = vmatpush1.bf16.msra.mxu0 %v1345
        %1442 = vmatprep.subr.bf16.mxu0 0
        %1443 = vmatpush2.bf16.msra.mxu0 0
        %1444 = vmatprep.subr.bf16.mxu0 0
        %1445 = vmatpush2.bf16.msra.mxu0 0
        %1446 = vmatprep.subr.bf16.mxu0 0
        %1447 = vmatpush2.bf16.msra.mxu0 0
        %1448 = vmatprep.subr.bf16.mxu0 0
        %1449 = vmatpush2.bf16.msra.mxu0 0
        %1450 = vmatprep.subr.bf16.mxu0 0
        %1451 = vmatpush2.bf16.msra.mxu0 0
        %1452 = vmatprep.subr.bf16.mxu0 0
        %1453 = vmatpush2.bf16.msra.mxu0 0
        %1454 = vmatprep.subr.bf16.mxu0 0
        %1455 = vmatpush2.bf16.msra.mxu0 0
        %1456 = vmatprep.subr.bf16.mxu0 0
        %1457 = vmatpush2.bf16.msra.mxu0 0
        %1458 = vmatprep.mubr.bf16.mxu0 0
        %1459 = vmatmul.mubr.bf16.gmra.mxu0 %v1371
        %v1460 = vpop.f32.mrf.mxu0
        %v1461 = vadd.f32 %v1368, %v1460
        %v1462 = vpop.f32.mrf.mxu0
        %v1463 = vadd.f32 %v1368, %v1462
        %v1464 = vpop.f32.mrf.mxu0
        %v1465 = vpop.f32.mrf.mxu0
        %1466 = vdwg.mxu0
        %v1467 = vmul.f32 %v1420, %v496
        %v1468 = vmul.f32 %v1422, %v500
        %v1469 = vmul.f32 %v1461, %v504
        %v1470 = vmul.f32 %v1463, %v508
        %v1471 = vpack.c.bf16 %v1467, %v1467
        %v1472 = vpack.c.bf16 %v1468, %v1468
        %v1473 = vpack.c.bf16 %v1469, %v1469
        %v1474 = vpack.c.bf16 %v1470, %v1470
        %v1479 = vunpack.c.l.b16 %v1471
        %v1480 = vunpack.c.l.b16 %v1472
        %v1481 = vunpack.c.l.b16 %v1473
        %v1482 = vunpack.c.l.b16 %v1474
        %v1483 = vpack.c.b16 %v1480, %v1479
        %v1484 = vpack.c.b16 %v1482, %v1481
        %1487 = vst [vmem:[#allocation2 + $0x4] sm:$0xff] %v1483
        %1488 = vst [vmem:[#allocation2 + $0xc] sm:$0xff] %v1484
        %v1489 = vld [vmem:[#allocation2] sm:$0xff]
        %v1490 = vld [vmem:[#allocation2 + $0x8] sm:$0xff]
        %v1491 = vld [vmem:[#allocation2 + $0x10] sm:$0xf]
        %v1492 = vunpack.c.l.bf16 %v1489
        %v1493 = vunpack.c.h.bf16 %v1489
        %v1494 = vunpack.c.l.bf16 %v1490
        %v1495 = vunpack.c.h.bf16 %v1490
        %v1496 = vunpack.c.l.bf16 %v1491
        %1502 = vrot.lane.b32.xlu0 %v1492, 42
        %v1503 = vpop.permute.xlu0 %1502
        %1504 = vrot.lane.b32.xlu0 %v1493, 42
        %v1505 = vpop.permute.xlu0 %1504
        %1506 = vrot.lane.b32.xlu0 %v1494, 42
        %v1507 = vpop.permute.xlu0 %1506
        %1508 = vrot.lane.b32.xlu0 %v1495, 42
        %v1509 = vpop.permute.xlu0 %1508
        %1510 = vrot.lane.b32.xlu0 %v1496, 42
        %v1511 = vpop.permute.xlu0 %1510
        %v1512 = vsel %vm558, %v1503, %v1505
        %v1513 = vsel %vm558, %v1505, %v1507
        %v1514 = vsel %vm558, %v1507, %v1509
        %v1515 = vsel %vm558, %v1509, %v1511
        %1520 = vst [vmem:[#allocation3] sm:$0xff] %v1512
        %1521 = vst [vmem:[#allocation3 + $0x8] sm:$0xff] %v1513
        %1522 = vst [vmem:[#allocation3 + $0x10] sm:$0xff] %v1514
        %1523 = vst [vmem:[#allocation3 + $0x18] sm:$0xff] %v1515
        %v1524 = vld [vmem:[#allocation2] sm:$0xff]
        %v1525 = vld [vmem:[#allocation2 + $0x8] sm:$0xff]
        %v1526 = vld [vmem:[#allocation2 + $0x10] sm:$0xf]
        %v1527 = vunpack.c.l.bf16 %v1524
        %v1528 = vunpack.c.h.bf16 %v1524
        %v1529 = vunpack.c.l.bf16 %v1525
        %v1530 = vunpack.c.h.bf16 %v1525
        %v1531 = vunpack.c.l.bf16 %v1526
        %1537 = vrot.lane.b32.xlu0 %v1527, 40
        %v1538 = vpop.permute.xlu0 %1537
        %1539 = vrot.lane.b32.xlu0 %v1528, 40
        %v1540 = vpop.permute.xlu0 %1539
        %1541 = vrot.lane.b32.xlu0 %v1529, 40
        %v1542 = vpop.permute.xlu0 %1541
        %1543 = vrot.lane.b32.xlu0 %v1530, 40
        %v1544 = vpop.permute.xlu0 %1543
        %1545 = vrot.lane.b32.xlu0 %v1531, 40
        %v1546 = vpop.permute.xlu0 %1545
        %v1547 = vsel %vm594, %v1538, %v1540
        %v1548 = vsel %vm594, %v1540, %v1542
        %v1549 = vsel %vm594, %v1542, %v1544
        %v1550 = vsel %vm594, %v1544, %v1546
        %1555 = vst [vmem:[#allocation3 + $0x20] sm:$0xff] %v1547
        %1556 = vst [vmem:[#allocation3 + $0x28] sm:$0xff] %v1548
        %1557 = vst [vmem:[#allocation3 + $0x30] sm:$0xff] %v1549
        %1558 = vst [vmem:[#allocation3 + $0x38] sm:$0xff] %v1550
        %v1559 = vld [vmem:[#allocation2] sm:$0xff]
        %v1560 = vld [vmem:[#allocation2 + $0x8] sm:$0xff]
        %v1561 = vld [vmem:[#allocation2 + $0x10] sm:$0xf]
        %v1562 = vunpack.c.l.bf16 %v1559
        %v1563 = vunpack.c.h.bf16 %v1559
        %v1564 = vunpack.c.l.bf16 %v1560
        %v1565 = vunpack.c.h.bf16 %v1560
        %v1566 = vunpack.c.l.bf16 %v1561
        %1572 = vrot.lane.b32.xlu0 %v1562, 38
        %v1573 = vpop.permute.xlu0 %1572
        %1574 = vrot.lane.b32.xlu0 %v1563, 38
        %v1575 = vpop.permute.xlu0 %1574
        %1576 = vrot.lane.b32.xlu0 %v1564, 38
        %v1577 = vpop.permute.xlu0 %1576
        %1578 = vrot.lane.b32.xlu0 %v1565, 38
        %v1579 = vpop.permute.xlu0 %1578
        %1580 = vrot.lane.b32.xlu0 %v1566, 38
        %v1581 = vpop.permute.xlu0 %1580
        %v1582 = vsel %vm630, %v1573, %v1575
        %v1583 = vsel %vm630, %v1575, %v1577
        %v1584 = vsel %vm630, %v1577, %v1579
        %v1585 = vsel %vm630, %v1579, %v1581
        %1590 = vst [vmem:[#allocation3 + $0x40] sm:$0xff] %v1582
        %1591 = vst [vmem:[#allocation3 + $0x48] sm:$0xff] %v1583
        %1592 = vst [vmem:[#allocation3 + $0x50] sm:$0xff] %v1584
        %1593 = vst [vmem:[#allocation3 + $0x58] sm:$0xff] %v1585
        %v1594 = vld [vmem:[#allocation2] sm:$0xff]
        %v1595 = vld [vmem:[#allocation2 + $0x8] sm:$0xff]
        %v1596 = vld [vmem:[#allocation2 + $0x10] sm:$0xf]
        %v1597 = vunpack.c.l.bf16 %v1594
        %v1598 = vunpack.c.h.bf16 %v1594
        %v1599 = vunpack.c.l.bf16 %v1595
        %v1600 = vunpack.c.h.bf16 %v1595
        %v1601 = vunpack.c.l.bf16 %v1596
        %1607 = vrot.lane.b32.xlu0 %v1597, 2
        %v1608 = vpop.permute.xlu0 %1607
        %1609 = vrot.lane.b32.xlu0 %v1598, 2
        %v1610 = vpop.permute.xlu0 %1609
        %1611 = vrot.lane.b32.xlu0 %v1599, 2
        %v1612 = vpop.permute.xlu0 %1611
        %1613 = vrot.lane.b32.xlu0 %v1600, 2
        %v1614 = vpop.permute.xlu0 %1613
        %1615 = vrot.lane.b32.xlu0 %v1601, 2
        %v1616 = vpop.permute.xlu0 %1615
        %v1617 = vsel %vm666, %v1608, %v1610
        %v1618 = vsel %vm666, %v1610, %v1612
        %v1619 = vsel %vm666, %v1612, %v1614
        %v1620 = vsel %vm666, %v1614, %v1616
        %1625 = vst [vmem:[#allocation3 + $0x60] sm:$0xff] %v1617
        %1626 = vst [vmem:[#allocation3 + $0x68] sm:$0xff] %v1618
        %1627 = vst [vmem:[#allocation3 + $0x70] sm:$0xff] %v1619
        %1628 = vst [vmem:[#allocation3 + $0x78] sm:$0xff] %v1620
        %v1629 = vld [vmem:[#allocation2 + $0x4] sm:$0xff]
        %v1630 = vld [vmem:[#allocation2 + $0xc] sm:$0xff]
        %v1631 = vunpack.c.l.bf16 %v1629
        %v1632 = vunpack.c.h.bf16 %v1629
        %v1633 = vunpack.c.l.bf16 %v1630
        %v1634 = vunpack.c.h.bf16 %v1630
        %1635 = vst [vmem:[#allocation3 + $0x80] sm:$0xff] %v1631
        %1636 = vst [vmem:[#allocation3 + $0x88] sm:$0xff] %v1632
        %1637 = vst [vmem:[#allocation3 + $0x90] sm:$0xff] %v1633
        %1638 = vst [vmem:[#allocation3 + $0x98] sm:$0xff] %v1634
        %v1639 = vld [vmem:[#allocation2 + $0x4] sm:$0xff]
        %v1640 = vld [vmem:[#allocation2 + $0xc] sm:$0xff]
        %v1641 = vld [vmem:[#allocation2 + $0x14] sm:$0xf]
        %v1642 = vunpack.c.l.bf16 %v1639
        %v1643 = vunpack.c.h.bf16 %v1639
        %v1644 = vunpack.c.l.bf16 %v1640
        %v1645 = vunpack.c.h.bf16 %v1640
        %v1646 = vunpack.c.l.bf16 %v1641
        %1652 = vrot.lane.b32.xlu0 %v1642, 126
        %v1653 = vpop.permute.xlu0 %1652
        %1654 = vrot.lane.b32.xlu0 %v1643, 126
        %v1655 = vpop.permute.xlu0 %1654
        %1656 = vrot.lane.b32.xlu0 %v1644, 126
        %v1657 = vpop.permute.xlu0 %1656
        %1658 = vrot.lane.b32.xlu0 %v1645, 126
        %v1659 = vpop.permute.xlu0 %1658
        %1660 = vrot.lane.b32.xlu0 %v1646, 126
        %v1661 = vpop.permute.xlu0 %1660
        %v1662 = vsel %vm712, %v1653, %v1655
        %v1663 = vsel %vm712, %v1655, %v1657
        %v1664 = vsel %vm712, %v1657, %v1659
        %v1665 = vsel %vm712, %v1659, %v1661
        %1670 = vst [vmem:[#allocation3 + $0xa0] sm:$0xff] %v1662
        %1671 = vst [vmem:[#allocation3 + $0xa8] sm:$0xff] %v1663
        %1672 = vst [vmem:[#allocation3 + $0xb0] sm:$0xff] %v1664
        %1673 = vst [vmem:[#allocation3 + $0xb8] sm:$0xff] %v1665
        %v1674 = vld [vmem:[#allocation2 + $0x4] sm:$0xff]
        %v1675 = vld [vmem:[#allocation2 + $0xc] sm:$0xff]
        %v1676 = vld [vmem:[#allocation2 + $0x14] sm:$0xf]
        %v1677 = vunpack.c.l.bf16 %v1674
        %v1678 = vunpack.c.h.bf16 %v1674
        %v1679 = vunpack.c.l.bf16 %v1675
        %v1680 = vunpack.c.h.bf16 %v1675
        %v1681 = vunpack.c.l.bf16 %v1676
        %1687 = vrot.lane.b32.xlu0 %v1677, 90
        %v1688 = vpop.permute.xlu0 %1687
        %1689 = vrot.lane.b32.xlu0 %v1678, 90
        %v1690 = vpop.permute.xlu0 %1689
        %1691 = vrot.lane.b32.xlu0 %v1679, 90
        %v1692 = vpop.permute.xlu0 %1691
        %1693 = vrot.lane.b32.xlu0 %v1680, 90
        %v1694 = vpop.permute.xlu0 %1693
        %1695 = vrot.lane.b32.xlu0 %v1681, 90
        %v1696 = vpop.permute.xlu0 %1695
        %v1697 = vsel %vm748, %v1688, %v1690
        %v1698 = vsel %vm748, %v1690, %v1692
        %v1699 = vsel %vm748, %v1692, %v1694
        %v1700 = vsel %vm748, %v1694, %v1696
        %1705 = vst [vmem:[#allocation3 + $0xc0] sm:$0xff] %v1697
        %1706 = vst [vmem:[#allocation3 + $0xc8] sm:$0xff] %v1698
        %1707 = vst [vmem:[#allocation3 + $0xd0] sm:$0xff] %v1699
        %1708 = vst [vmem:[#allocation3 + $0xd8] sm:$0xff] %v1700
        %v1709 = vld [vmem:[#allocation2 + $0x4] sm:$0xff]
        %v1710 = vld [vmem:[#allocation2 + $0xc] sm:$0xff]
        %v1711 = vld [vmem:[#allocation2 + $0x14] sm:$0xf]
        %v1712 = vunpack.c.l.bf16 %v1709
        %v1713 = vunpack.c.h.bf16 %v1709
        %v1714 = vunpack.c.l.bf16 %v1710
        %v1715 = vunpack.c.h.bf16 %v1710
        %v1716 = vunpack.c.l.bf16 %v1711
        %1722 = vrot.lane.b32.xlu0 %v1712, 88
        %v1723 = vpop.permute.xlu0 %1722
        %1724 = vrot.lane.b32.xlu0 %v1713, 88
        %v1725 = vpop.permute.xlu0 %1724
        %1726 = vrot.lane.b32.xlu0 %v1714, 88
        %v1727 = vpop.permute.xlu0 %1726
        %1728 = vrot.lane.b32.xlu0 %v1715, 88
        %v1729 = vpop.permute.xlu0 %1728
        %1730 = vrot.lane.b32.xlu0 %v1716, 88
        %v1731 = vpop.permute.xlu0 %1730
        %v1732 = vsel %vm784, %v1723, %v1725
        %v1733 = vsel %vm784, %v1725, %v1727
        %v1734 = vsel %vm784, %v1727, %v1729
        %v1735 = vsel %vm784, %v1729, %v1731
        %1740 = vst [vmem:[#allocation3 + $0xe0] sm:$0xff] %v1732
        %1741 = vst [vmem:[#allocation3 + $0xe8] sm:$0xff] %v1733
        %1742 = vst [vmem:[#allocation3 + $0xf0] sm:$0xff] %v1734
        %1743 = vst [vmem:[#allocation3 + $0xf8] sm:$0xff] %v1735
        %v1744 = vld [vmem:[#allocation2 + $0x4] sm:$0xff]
        %v1745 = vld [vmem:[#allocation2 + $0xc] sm:$0xff]
        %v1746 = vld [vmem:[#allocation2 + $0x14] sm:$0xf]
        %v1747 = vunpack.c.l.bf16 %v1744
        %v1748 = vunpack.c.h.bf16 %v1744
        %v1749 = vunpack.c.l.bf16 %v1745
        %v1750 = vunpack.c.h.bf16 %v1745
        %v1751 = vunpack.c.l.bf16 %v1746
        %1757 = vrot.lane.b32.xlu0 %v1747, 86
        %v1758 = vpop.permute.xlu0 %1757
        %1759 = vrot.lane.b32.xlu0 %v1748, 86
        %v1760 = vpop.permute.xlu0 %1759
        %1761 = vrot.lane.b32.xlu0 %v1749, 86
        %v1762 = vpop.permute.xlu0 %1761
        %1763 = vrot.lane.b32.xlu0 %v1750, 86
        %v1764 = vpop.permute.xlu0 %1763
        %1765 = vrot.lane.b32.xlu0 %v1751, 86
        %v1766 = vpop.permute.xlu0 %1765
        %v1767 = vsel %vm820, %v1758, %v1760
        %v1768 = vsel %vm820, %v1760, %v1762
        %v1769 = vsel %vm820, %v1762, %v1764
        %v1770 = vsel %vm820, %v1764, %v1766
        %1775 = vst [vmem:[#allocation3 + $0x100] sm:$0xff] %v1767
        %1776 = vst [vmem:[#allocation3 + $0x108] sm:$0xff] %v1768
        %1777 = vst [vmem:[#allocation3 + $0x110] sm:$0xff] %v1769
        %1778 = vst [vmem:[#allocation3 + $0x118] sm:$0xff] %v1770
        %v1779 = vld [vmem:[#allocation3] sm:$0xff]
        %v1780 = vld [vmem:[#allocation3 + $0x8] sm:$0xff]
        %v1781 = vld [vmem:[#allocation3 + $0x10] sm:$0xff]
        %v1782 = vld [vmem:[#allocation3 + $0x18] sm:$0xff]
        %v1783 = vld [vmem:[#allocation3 + $0x20] sm:$0xff]
        %v1784 = vld [vmem:[#allocation3 + $0x28] sm:$0xff]
        %v1785 = vld [vmem:[#allocation3 + $0x30] sm:$0xff]
        %v1786 = vld [vmem:[#allocation3 + $0x38] sm:$0xff]
        %v1787 = vld [vmem:[#allocation3 + $0x40] sm:$0xff]
        %v1788 = vld [vmem:[#allocation3 + $0x48] sm:$0xff]
        %v1789 = vld [vmem:[#allocation3 + $0x50] sm:$0xff]
        %v1790 = vld [vmem:[#allocation3 + $0x58] sm:$0xff]
        %v1791 = vld [vmem:[#allocation3 + $0x60] sm:$0xff]
        %v1792 = vld [vmem:[#allocation3 + $0x68] sm:$0xff]
        %v1793 = vld [vmem:[#allocation3 + $0x70] sm:$0xff]
        %v1794 = vld [vmem:[#allocation3 + $0x78] sm:$0xff]
        %v1795 = vld [vmem:[#allocation3 + $0x80] sm:$0xff]
        %v1796 = vld [vmem:[#allocation3 + $0x88] sm:$0xff]
        %v1797 = vld [vmem:[#allocation3 + $0x90] sm:$0xff]
        %v1798 = vld [vmem:[#allocation3 + $0x98] sm:$0xff]
        %v1799 = vld [vmem:[#allocation3 + $0xa0] sm:$0xff]
        %v1800 = vld [vmem:[#allocation3 + $0xa8] sm:$0xff]
        %v1801 = vld [vmem:[#allocation3 + $0xb0] sm:$0xff]
        %v1802 = vld [vmem:[#allocation3 + $0xb8] sm:$0xff]
        %v1803 = vld [vmem:[#allocation3 + $0xc0] sm:$0xff]
        %v1804 = vld [vmem:[#allocation3 + $0xc8] sm:$0xff]
        %v1805 = vld [vmem:[#allocation3 + $0xd0] sm:$0xff]
        %v1806 = vld [vmem:[#allocation3 + $0xd8] sm:$0xff]
        %v1807 = vld [vmem:[#allocation3 + $0xe0] sm:$0xff]
        %v1808 = vld [vmem:[#allocation3 + $0xe8] sm:$0xff]
        %v1809 = vld [vmem:[#allocation3 + $0xf0] sm:$0xff]
        %v1810 = vld [vmem:[#allocation3 + $0xf8] sm:$0xff]
        %v1811 = vld [vmem:[#allocation3 + $0x100] sm:$0xff]
        %v1812 = vld [vmem:[#allocation3 + $0x108] sm:$0xff]
        %v1813 = vld [vmem:[#allocation3 + $0x110] sm:$0xff]
        %v1814 = vld [vmem:[#allocation3 + $0x118] sm:$0xff]
        %v1815 = vpack.c.bf16 %v1783, %v1779
        %v1816 = vpack.c.bf16 %v1784, %v1780
        %v1817 = vpack.c.bf16 %v1785, %v1781
        %v1818 = vpack.c.bf16 %v1786, %v1782
        %v1819 = vpack.c.bf16 %v1791, %v1787
        %v1820 = vpack.c.bf16 %v1792, %v1788
        %v1821 = vpack.c.bf16 %v1793, %v1789
        %v1822 = vpack.c.bf16 %v1794, %v1790
        %v1823 = vpack.c.bf16 %v1799, %v1795
        %v1824 = vpack.c.bf16 %v1800, %v1796
        %v1825 = vpack.c.bf16 %v1801, %v1797
        %v1826 = vpack.c.bf16 %v1802, %v1798
        %v1827 = vpack.c.bf16 %v1807, %v1803
        %v1828 = vpack.c.bf16 %v1808, %v1804
        %v1829 = vpack.c.bf16 %v1809, %v1805
        %v1830 = vpack.c.bf16 %v1810, %v1806
        %v1831 = vpack.c.bf16 %v1811, %v1811
        %v1832 = vpack.c.bf16 %v1812, %v1812
        %v1833 = vpack.c.bf16 %v1813, %v1813
        %v1834 = vpack.c.bf16 %v1814, %v1814
        %v1835 = vld [vmem:[#allocation9] sm:$0xf]
        %v1836 = vld [vmem:[%s7] sm:$0xff]
        %1838 = vset.pattern.permute.xlu0 0
        %1839 = vperm.xlu0 %1838, %v1836
        %v1840 = vpop.permute.xlu0 %1839
        %v1843 = vsel %vm896, %v1835, 0
        %v1846 = vsel %vm900, %v1831, 0
        %v1849 = vsel %vm900, %v1832, 0
        %v1852 = vsel %vm900, %v1833, 0
        %v1855 = vsel %vm900, %v1834, 0
        %1857 = vmatprep.subr.bf16.mxu0 0
        %1858 = vmatpush1.bf16.msra.mxu0 0
        %1859 = vmatprep.subr.bf16.mxu0 0
        %1860 = vmatpush1.bf16.msra.mxu0 0
        %1861 = vmatprep.subr.bf16.mxu0 0
        %1862 = vmatpush1.bf16.msra.mxu0 0
        %1863 = vmatprep.subr.bf16.mxu0 %v1849
        %1864 = vmatpush1.bf16.msra.mxu0 %v1846
        %1865 = vmatprep.subr.bf16.mxu0 %v1828
        %1866 = vmatpush1.bf16.msra.mxu0 %v1827
        %1867 = vmatprep.subr.bf16.mxu0 %v1824
        %1868 = vmatpush1.bf16.msra.mxu0 %v1823
        %1869 = vmatprep.subr.bf16.mxu0 %v1820
        %1870 = vmatpush1.bf16.msra.mxu0 %v1819
        %1871 = vmatprep.subr.bf16.mxu0 %v1816
        %1872 = vmatpush1.bf16.msra.mxu0 %v1815
        %1873 = vmatprep.subr.bf16.mxu0 0
        %1874 = vmatpush2.bf16.msra.mxu0 0
        %1875 = vmatprep.subr.bf16.mxu0 0
        %1876 = vmatpush2.bf16.msra.mxu0 0
        %1877 = vmatprep.subr.bf16.mxu0 0
        %1878 = vmatpush2.bf16.msra.mxu0 0
        %1879 = vmatprep.subr.bf16.mxu0 0
        %1880 = vmatpush2.bf16.msra.mxu0 0
        %1881 = vmatprep.subr.bf16.mxu0 0
        %1882 = vmatpush2.bf16.msra.mxu0 0
        %1883 = vmatprep.subr.bf16.mxu0 0
        %1884 = vmatpush2.bf16.msra.mxu0 0
        %1885 = vmatprep.subr.bf16.mxu0 0
        %1886 = vmatpush2.bf16.msra.mxu0 0
        %1887 = vmatprep.subr.bf16.mxu0 0
        %1888 = vmatpush2.bf16.msra.mxu0 0
        %1889 = vmatprep.mubr.bf16.mxu0 0
        %1890 = vmatmul.mubr.bf16.gmra.mxu0 %v1843
        %v1891 = vpop.f32.mrf.mxu0
        %v1892 = vadd.f32 %v1840, %v1891
        %v1893 = vpop.f32.mrf.mxu0
        %v1894 = vadd.f32 %v1840, %v1893
        %v1895 = vpop.f32.mrf.mxu0
        %v1896 = vpop.f32.mrf.mxu0
        %1897 = vdwg.mxu0
        %1898 = vmatprep.subr.bf16.mxu0 0
        %1899 = vmatpush1.bf16.msra.mxu0 0
        %1900 = vmatprep.subr.bf16.mxu0 0
        %1901 = vmatpush1.bf16.msra.mxu0 0
        %1902 = vmatprep.subr.bf16.mxu0 0
        %1903 = vmatpush1.bf16.msra.mxu0 0
        %1904 = vmatprep.subr.bf16.mxu0 %v1855
        %1905 = vmatpush1.bf16.msra.mxu0 %v1852
        %1906 = vmatprep.subr.bf16.mxu0 %v1830
        %1907 = vmatpush1.bf16.msra.mxu0 %v1829
        %1908 = vmatprep.subr.bf16.mxu0 %v1826
        %1909 = vmatpush1.bf16.msra.mxu0 %v1825
        %1910 = vmatprep.subr.bf16.mxu0 %v1822
        %1911 = vmatpush1.bf16.msra.mxu0 %v1821
        %1912 = vmatprep.subr.bf16.mxu0 %v1818
        %1913 = vmatpush1.bf16.msra.mxu0 %v1817
        %1914 = vmatprep.subr.bf16.mxu0 0
        %1915 = vmatpush2.bf16.msra.mxu0 0
        %1916 = vmatprep.subr.bf16.mxu0 0
        %1917 = vmatpush2.bf16.msra.mxu0 0
        %1918 = vmatprep.subr.bf16.mxu0 0
        %1919 = vmatpush2.bf16.msra.mxu0 0
        %1920 = vmatprep.subr.bf16.mxu0 0
        %1921 = vmatpush2.bf16.msra.mxu0 0
        %1922 = vmatprep.subr.bf16.mxu0 0
        %1923 = vmatpush2.bf16.msra.mxu0 0
        %1924 = vmatprep.subr.bf16.mxu0 0
        %1925 = vmatpush2.bf16.msra.mxu0 0
        %1926 = vmatprep.subr.bf16.mxu0 0
        %1927 = vmatpush2.bf16.msra.mxu0 0
        %1928 = vmatprep.subr.bf16.mxu0 0
        %1929 = vmatpush2.bf16.msra.mxu0 0
        %1930 = vmatprep.mubr.bf16.mxu0 0
        %1931 = vmatmul.mubr.bf16.gmra.mxu0 %v1843
        %v1932 = vpop.f32.mrf.mxu0
        %v1933 = vadd.f32 %v1840, %v1932
        %v1934 = vpop.f32.mrf.mxu0
        %v1935 = vadd.f32 %v1840, %v1934
        %v1936 = vpop.f32.mrf.mxu0
        %v1937 = vpop.f32.mrf.mxu0
        %1938 = vdwg.mxu0
        %v1939 = vmul.f32 %v1892, %v496
        %v1940 = vmul.f32 %v1894, %v500
        %v1941 = vmul.f32 %v1933, %v504
        %v1942 = vmul.f32 %v1935, %v508
        %v1943 = vpack.c.bf16 %v1939, %v1939
        %v1944 = vpack.c.bf16 %v1940, %v1940
        %v1945 = vpack.c.bf16 %v1941, %v1941
        %v1946 = vpack.c.bf16 %v1942, %v1942
        %v1947 = vld [vmem:[%s8] sm:$0xf]
        %v1948 = vld [vmem:[%s9] sm:$0xff]
        %1950 = vset.pattern.permute.xlu0 0
        %1951 = vperm.xlu0 %1950, %v1948
        %v1952 = vpop.permute.xlu0 %1951
        %vm1954 = vcmask 64512
        %v1956 = vsel %vm1954, %v1947, 0
        %v1959 = vsel %vm900, %v1943, 0
        %v1962 = vsel %vm900, %v1944, 0
        %v1965 = vsel %vm900, %v1945, 0
        %v1968 = vsel %vm900, %v1946, 0
        %1970 = vmatprep.subr.bf16.mxu0 0
        %1971 = vmatpush1.bf16.msra.mxu0 0
        %1972 = vmatprep.subr.bf16.mxu0 0
        %1973 = vmatpush1.bf16.msra.mxu0 0
        %1974 = vmatprep.subr.bf16.mxu0 0
        %1975 = vmatpush1.bf16.msra.mxu0 0
        %1976 = vmatprep.subr.bf16.mxu0 0
        %1977 = vmatpush1.bf16.msra.mxu0 0
        %1978 = vmatprep.subr.bf16.mxu0 0
        %1979 = vmatpush1.bf16.msra.mxu0 0
        %1980 = vmatprep.subr.bf16.mxu0 0
        %1981 = vmatpush1.bf16.msra.mxu0 0
        %1982 = vmatprep.subr.bf16.mxu0 0
        %1983 = vmatpush1.bf16.msra.mxu0 0
        %1984 = vmatprep.subr.bf16.mxu0 %v1962
        %1985 = vmatpush1.bf16.msra.mxu0 %v1959
        %1986 = vmatprep.subr.bf16.mxu0 0
        %1987 = vmatpush2.bf16.msra.mxu0 0
        %1988 = vmatprep.subr.bf16.mxu0 0
        %1989 = vmatpush2.bf16.msra.mxu0 0
        %1990 = vmatprep.subr.bf16.mxu0 0
        %1991 = vmatpush2.bf16.msra.mxu0 0
        %1992 = vmatprep.subr.bf16.mxu0 0
        %1993 = vmatpush2.bf16.msra.mxu0 0
        %1994 = vmatprep.subr.bf16.mxu0 0
        %1995 = vmatpush2.bf16.msra.mxu0 0
        %1996 = vmatprep.subr.bf16.mxu0 0
        %1997 = vmatpush2.bf16.msra.mxu0 0
        %1998 = vmatprep.subr.bf16.mxu0 0
        %1999 = vmatpush2.bf16.msra.mxu0 0
        %2000 = vmatprep.subr.bf16.mxu0 0
        %2001 = vmatpush2.bf16.msra.mxu0 0
        %2002 = vmatprep.mubr.bf16.mxu0 0
        %2003 = vmatmul.mubr.bf16.gmra.mxu0 %v1956
        %v2004 = vpop.f32.mrf.mxu0
        %v2005 = vadd.f32 %v1952, %v2004
        %v2006 = vpop.f32.mrf.mxu0
        %v2007 = vadd.f32 %v1952, %v2006
        %v2008 = vpop.f32.mrf.mxu0
        %v2009 = vpop.f32.mrf.mxu0
        %2010 = vdwg.mxu0
        %2011 = vmatprep.subr.bf16.mxu0 0
        %2012 = vmatpush1.bf16.msra.mxu0 0
        %2013 = vmatprep.subr.bf16.mxu0 0
        %2014 = vmatpush1.bf16.msra.mxu0 0
        %2015 = vmatprep.subr.bf16.mxu0 0
        %2016 = vmatpush1.bf16.msra.mxu0 0
        %2017 = vmatprep.subr.bf16.mxu0 0
        %2018 = vmatpush1.bf16.msra.mxu0 0
        %2019 = vmatprep.subr.bf16.mxu0 0
        %2020 = vmatpush1.bf16.msra.mxu0 0
        %2021 = vmatprep.subr.bf16.mxu0 0
        %2022 = vmatpush1.bf16.msra.mxu0 0
        %2023 = vmatprep.subr.bf16.mxu0 0
        %2024 = vmatpush1.bf16.msra.mxu0 0
        %2025 = vmatprep.subr.bf16.mxu0 %v1968
        %2026 = vmatpush1.bf16.msra.mxu0 %v1965
        %2027 = vmatprep.subr.bf16.mxu0 0
        %2028 = vmatpush2.bf16.msra.mxu0 0
        %2029 = vmatprep.subr.bf16.mxu0 0
        %2030 = vmatpush2.bf16.msra.mxu0 0
        %2031 = vmatprep.subr.bf16.mxu0 0
        %2032 = vmatpush2.bf16.msra.mxu0 0
        %2033 = vmatprep.subr.bf16.mxu0 0
        %2034 = vmatpush2.bf16.msra.mxu0 0
        %2035 = vmatprep.subr.bf16.mxu0 0
        %2036 = vmatpush2.bf16.msra.mxu0 0
        %2037 = vmatprep.subr.bf16.mxu0 0
        %2038 = vmatpush2.bf16.msra.mxu0 0
        %2039 = vmatprep.subr.bf16.mxu0 0
        %2040 = vmatpush2.bf16.msra.mxu0 0
        %2041 = vmatprep.subr.bf16.mxu0 0
        %2042 = vmatpush2.bf16.msra.mxu0 0
        %2043 = vmatprep.mubr.bf16.mxu0 0
        %2044 = vmatmul.mubr.bf16.gmra.mxu0 %v1956
        %v2045 = vpop.f32.mrf.mxu0
        %v2046 = vadd.f32 %v1952, %v2045
        %v2047 = vpop.f32.mrf.mxu0
        %v2048 = vadd.f32 %v1952, %v2047
        %v2049 = vpop.f32.mrf.mxu0
        %v2050 = vpop.f32.mrf.mxu0
        %2051 = vdwg.mxu0
        %v2052 = vmul.f32 %v2005, %v496
        %v2053 = vmul.f32 %v2007, %v500
        %v2054 = vmul.f32 %v2046, %v504
        %v2055 = vmul.f32 %v2048, %v508
        %v2056 = vld [vmem:[%s10] sm:$0xf]
        %v2057 = vld [vmem:[%s10 + $0x4] sm:$0x3]
        %v2058 = vpack.c.bf16 %v2052, %v2052
        %v2059 = vpack.c.bf16 %v2053, %v2053
        %v2060 = vpack.c.bf16 %v2054, %v2054
        %v2061 = vpack.c.bf16 %v2055, %v2055
        %v2062 = vld [vmem:[%s11] sm:$0xff]
        %v2063 = vld [vmem:[%s11 + $0x8] sm:$0xf]
        %2065 = vset.pattern.permute.xlu0 0
        %2066 = vperm.xlu0 %2065, %v2062
        %v2067 = vpop.permute.xlu0 %2066
        %2070 = vset.pattern.permute.xlu0 0
        %2071 = vperm.xlu0 %2070, %v2063
        %v2072 = vpop.permute.xlu0 %2071
        %v2076 = vunpack.c.l.b16 %v2056
        %v2077 = vunpack.c.l.b16 %v2057
        %v2078 = vpack.c.b16 %v2077, %v2076
        %v2080 = vsel %vm1954, %v2078, 0
        %v2083 = vsel %vm900, %v2058, 0
        %v2086 = vsel %vm900, %v2059, 0
        %v2089 = vsel %vm900, %v2060, 0
        %v2092 = vsel %vm900, %v2061, 0
        %2094 = vmatprep.subr.bf16.mxu0 0
        %2095 = vmatpush1.bf16.msra.mxu0 0
        %2096 = vmatprep.subr.bf16.mxu0 0
        %2097 = vmatpush1.bf16.msra.mxu0 0
        %2098 = vmatprep.subr.bf16.mxu0 0
        %2099 = vmatpush1.bf16.msra.mxu0 0
        %2100 = vmatprep.subr.bf16.mxu0 0
        %2101 = vmatpush1.bf16.msra.mxu0 0
        %2102 = vmatprep.subr.bf16.mxu0 0
        %2103 = vmatpush1.bf16.msra.mxu0 0
        %2104 = vmatprep.subr.bf16.mxu0 0
        %2105 = vmatpush1.bf16.msra.mxu0 0
        %2106 = vmatprep.subr.bf16.mxu0 0
        %2107 = vmatpush1.bf16.msra.mxu0 0
        %2108 = vmatprep.subr.bf16.mxu0 %v2086
        %2109 = vmatpush1.bf16.msra.mxu0 %v2083
        %2110 = vmatprep.subr.bf16.mxu0 0
        %2111 = vmatpush2.bf16.msra.mxu0 0
        %2112 = vmatprep.subr.bf16.mxu0 0
        %2113 = vmatpush2.bf16.msra.mxu0 0
        %2114 = vmatprep.subr.bf16.mxu0 0
        %2115 = vmatpush2.bf16.msra.mxu0 0
        %2116 = vmatprep.subr.bf16.mxu0 0
        %2117 = vmatpush2.bf16.msra.mxu0 0
        %2118 = vmatprep.subr.bf16.mxu0 0
        %2119 = vmatpush2.bf16.msra.mxu0 0
        %2120 = vmatprep.subr.bf16.mxu0 0
        %2121 = vmatpush2.bf16.msra.mxu0 0
        %2122 = vmatprep.subr.bf16.mxu0 0
        %2123 = vmatpush2.bf16.msra.mxu0 0
        %2124 = vmatprep.subr.bf16.mxu0 0
        %2125 = vmatpush2.bf16.msra.mxu0 0
        %2126 = vmatprep.mubr.bf16.mxu0 0
        %2127 = vmatmul.mubr.bf16.gmra.mxu0 %v2080
        %v2128 = vpop.f32.mrf.mxu0
        %v2129 = vadd.f32 %v2067, %v2128
        %v2130 = vpop.f32.mrf.mxu0
        %v2131 = vadd.f32 %v2067, %v2130
        %v2132 = vpop.f32.mrf.mxu0
        %v2133 = vadd.f32 %v2072, %v2132
        %v2134 = vpop.f32.mrf.mxu0
        %v2135 = vadd.f32 %v2072, %v2134
        %2136 = vdwg.mxu0
        %2137 = vmatprep.subr.bf16.mxu0 0
        %2138 = vmatpush1.bf16.msra.mxu0 0
        %2139 = vmatprep.subr.bf16.mxu0 0
        %2140 = vmatpush1.bf16.msra.mxu0 0
        %2141 = vmatprep.subr.bf16.mxu0 0
        %2142 = vmatpush1.bf16.msra.mxu0 0
        %2143 = vmatprep.subr.bf16.mxu0 0
        %2144 = vmatpush1.bf16.msra.mxu0 0
        %2145 = vmatprep.subr.bf16.mxu0 0
        %2146 = vmatpush1.bf16.msra.mxu0 0
        %2147 = vmatprep.subr.bf16.mxu0 0
        %2148 = vmatpush1.bf16.msra.mxu0 0
        %2149 = vmatprep.subr.bf16.mxu0 0
        %2150 = vmatpush1.bf16.msra.mxu0 0
        %2151 = vmatprep.subr.bf16.mxu0 %v2092
        %2152 = vmatpush1.bf16.msra.mxu0 %v2089
        %2153 = vmatprep.subr.bf16.mxu0 0
        %2154 = vmatpush2.bf16.msra.mxu0 0
        %2155 = vmatprep.subr.bf16.mxu0 0
        %2156 = vmatpush2.bf16.msra.mxu0 0
        %2157 = vmatprep.subr.bf16.mxu0 0
        %2158 = vmatpush2.bf16.msra.mxu0 0
        %2159 = vmatprep.subr.bf16.mxu0 0
        %2160 = vmatpush2.bf16.msra.mxu0 0
        %2161 = vmatprep.subr.bf16.mxu0 0
        %2162 = vmatpush2.bf16.msra.mxu0 0
        %2163 = vmatprep.subr.bf16.mxu0 0
        %2164 = vmatpush2.bf16.msra.mxu0 0
        %2165 = vmatprep.subr.bf16.mxu0 0
        %2166 = vmatpush2.bf16.msra.mxu0 0
        %2167 = vmatprep.subr.bf16.mxu0 0
        %2168 = vmatpush2.bf16.msra.mxu0 0
        %2169 = vmatprep.mubr.bf16.mxu0 0
        %2170 = vmatmul.mubr.bf16.gmra.mxu0 %v2080
        %v2171 = vpop.f32.mrf.mxu0
        %v2172 = vadd.f32 %v2067, %v2171
        %v2173 = vpop.f32.mrf.mxu0
        %v2174 = vadd.f32 %v2067, %v2173
        %v2175 = vpop.f32.mrf.mxu0
        %v2176 = vadd.f32 %v2072, %v2175
        %v2177 = vpop.f32.mrf.mxu0
        %v2178 = vadd.f32 %v2072, %v2177
        %2179 = vdwg.mxu0
        %v2184 = vcombine.low %v2129, %v2131
        %v2185 = vcombine.low %v2172, %v2174
        %2188 = vst [vmem:[%s475] sm:$0xff] %v2184
        %2189 = vst [vmem:[%s475 + $0x8] sm:$0xff] %v2185
        %v2190 = vxor.u32 %v2129, 2147483648
        %v2191 = vxor.u32 %v2131, 2147483648
        %v2192 = vxor.u32 %v2172, 2147483648
        %v2193 = vxor.u32 %v2174, 2147483648
        %v2194 = vxor.u32 %v2133, 2147483648
        %v2195 = vxor.u32 %v2135, 2147483648
        %v2196 = vxor.u32 %v2176, 2147483648
        %v2197 = vxor.u32 %v2178, 2147483648
        %v2198 = vmul.f32 %v2190, 1.442695
        %v2199 = vpow.pop %v2198
        %v2200 = vmul.f32 %v2191, 1.442695
        %v2201 = vpow.pop %v2200
        %v2202 = vmul.f32 %v2192, 1.442695
        %v2203 = vpow.pop %v2202
        %v2204 = vmul.f32 %v2193, 1.442695
        %v2205 = vpow.pop %v2204
        %v2206 = vmul.f32 %v2194, 1.442695
        %v2207 = vpow.pop %v2206
        %v2208 = vmul.f32 %v2195, 1.442695
        %v2209 = vpow.pop %v2208
        %v2210 = vmul.f32 %v2196, 1.442695
        %v2211 = vpow.pop %v2210
        %v2212 = vmul.f32 %v2197, 1.442695
        %v2213 = vpow.pop %v2212
        %v2214 = vadd.f32 %v2199, 1.0
        %v2215 = vadd.f32 %v2201, 1.0
        %v2216 = vadd.f32 %v2203, 1.0
        %v2217 = vadd.f32 %v2205, 1.0
        %v2218 = vadd.f32 %v2207, 1.0
        %v2219 = vadd.f32 %v2209, 1.0
        %v2220 = vadd.f32 %v2211, 1.0
        %v2221 = vadd.f32 %v2213, 1.0
        %v2222 = vrcp.pop %v2214
        %v2223 = vmul.f32 1.0, %v2222
        %v2224 = vrcp.pop %v2215
        %v2225 = vmul.f32 1.0, %v2224
        %v2226 = vrcp.pop %v2216
        %v2227 = vmul.f32 1.0, %v2226
        %v2228 = vrcp.pop %v2217
        %v2229 = vmul.f32 1.0, %v2228
        %v2230 = vrcp.pop %v2218
        %v2231 = vmul.f32 1.0, %v2230
        %v2232 = vrcp.pop %v2219
        %v2233 = vmul.f32 1.0, %v2232
        %v2234 = vrcp.pop %v2220
        %v2235 = vmul.f32 1.0, %v2234
        %v2236 = vrcp.pop %v2221
        %v2237 = vmul.f32 1.0, %v2236
        %v2238 = vld [vmem:[%s487] sm:$0xff]
        %v2239 = vld [vmem:[%s487 + $0x8] sm:$0xff]
        %v2240 = vld [vmem:[%s487 + $0x10] sm:$0xff]
        %v2241 = vld [vmem:[%s487 + $0x18] sm:$0xff]
        %v2246 = vrot.slane %v2238, 4
        %v2247 = vrot.slane %v2239, 4
        %v2248 = vrot.slane %v2240, 4
        %v2249 = vrot.slane %v2241, 4
        %v2254 = vmul.f32 %v2223, %v2246
        %v2255 = vmul.f32 %v2225, %v2247
        %v2256 = vmul.f32 %v2227, %v2248
        %v2257 = vmul.f32 %v2229, %v2249
        %v2258 = vmul.f32 %v2231, %v2246
        %v2259 = vmul.f32 %v2233, %v2247
        %v2260 = vmul.f32 %v2235, %v2248
        %v2261 = vmul.f32 %v2237, %v2249
        %v2270 = vrot.slane %v2254, 4
        %v2271 = vrot.slane %v2258, 4
        %v2272 = vsel %vm900, %v2270, %v2271
        %v2273 = vrot.slane %v2255, 4
        %v2274 = vrot.slane %v2259, 4
        %v2275 = vsel %vm900, %v2273, %v2274
        %v2276 = vrot.slane %v2256, 4
        %v2277 = vrot.slane %v2260, 4
        %v2278 = vsel %vm900, %v2276, %v2277
        %v2279 = vrot.slane %v2257, 4
        %v2280 = vrot.slane %v2261, 4
        %v2281 = vsel %vm900, %v2279, %v2280
        %2286 = vst [vmem:[%s482] sm:$0xff] %v2272
        %2287 = vst [vmem:[%s482 + $0x8] sm:$0xff] %v2275
        %2288 = vst [vmem:[%s482 + $0x10] sm:$0xff] %v2278
        %2289 = vst [vmem:[%s482 + $0x18] sm:$0xff] %v2281
        %s2290 = sand.u32 %s298, 1
        %s2291 = scalar_lea.sflag [#allocation6], %s2290
        %s2292 = sand.u32 %s298, 1
        %s2293 = smul.addr %s2292, 16
        %s2294 = scalar_lea.vmem [#allocation10], %s2293
        %s2295 = sand.u32 %s324, 1
        %s2296 = scalar_lea.sflag [#allocation12], %s2295
        %s2297 = sand.u32 %s324, 1
        %s2298 = smul.addr %s2297, 32
        %s2299 = scalar_lea.vmem [#allocation11], %s2298
        // Predicated region
        $region81: #{tpu_custom_call.1} parent=67 // pred_check
          %p2300 = pneg %p308
        $region82: #{tpu_custom_call.1} parent=67 // pred_check_branch
          %2302 = sbr.rel (%p2300) target = $region84
        $region83: #{tpu_custom_call.1} parent=67 // pred_region
          %s2304 = ssub.s32 256, 256
          %2305 = vsyncadd %s2291, %s2304
          %s2306 = smul.addr %s33, 4
          %s2307 = smul.addr %s2306, 64
          %s2308 = scalar_lea.hbm %s12, %s2307
          %s2310 = sshll.u32 %s2294, 4
          %s2311 = int_to_ptr.vmem [resolvable:$true] %s2310
          %2313 = dma.vmem_to_hbm [thread:$0]  %s2311, 256, %s2308, %s2291
        $region84: #{tpu_custom_call.1} parent=67 // pred_fallthru
          _
        // Predicated region
        $region85: #{tpu_custom_call.1} parent=67 // pred_check
          %p2314 = pneg %p334
        $region86: #{tpu_custom_call.1} parent=67 // pred_check_branch
          %2316 = sbr.rel (%p2314) target = $region88
        $region87: #{tpu_custom_call.1} parent=67 // pred_region
          %s2318 = ssub.s32 512, 512
          %2319 = vsyncadd %s2296, %s2318
          %s2320 = smul.addr %s33, 4
          %s2321 = smul.addr %s2320, 128
          %s2322 = scalar_lea.hbm %s13, %s2321
          %s2324 = sshll.u32 %s2299, 4
          %s2325 = int_to_ptr.vmem [resolvable:$true] %s2324
          %2327 = dma.vmem_to_hbm [thread:$0]  %s2325, 512, %s2322, %s2296
        $region88: #{tpu_custom_call.1} parent=67 // pred_fallthru
          _
      $region68: #{tpu_custom_call.1} parent=5 // pred_fallthru
        _
      %p2328 = scmp.le.s32.totalorder 2, %s28
      // Predicated region
      $region89: #{tpu_custom_call.1} parent=5 // pred_check
        %p2329 = pneg %p2328
      $region90: #{tpu_custom_call.1} parent=5 // pred_check_branch
        %2331 = sbr.rel (%p2329) target = $region92
      $region91: #{tpu_custom_call.1} parent=5 // pred_region
        %s2332 = ssub.s32 %s28, 2
        // Predicated region
        $region93: #{tpu_custom_call.1} parent=91 // pred_check
          %p2333 = pneg %p314
        $region94: #{tpu_custom_call.1} parent=91 // pred_check_branch
          %2335 = sbr.rel (%p2333) target = $region96
        $region95: #{tpu_custom_call.1} parent=91 // pred_region
          %s2336 = sand.u32 %s299, 1
          %s2337 = scalar_lea.sflag [#allocation6], %s2336
          %s2338 = sand.u32 %s299, 1
          %s2339 = smul.addr %s2338, 16
          %s2340 = scalar_lea.vmem [#allocation10], %s2339
          %2341 = dma.done %s2337, 256
        $region96: #{tpu_custom_call.1} parent=91 // pred_fallthru
          _
        // Predicated region
        $region97: #{tpu_custom_call.1} parent=91 // pred_check
          %p2342 = pneg %p340
        $region98: #{tpu_custom_call.1} parent=91 // pred_check_branch
          %2344 = sbr.rel (%p2342) target = $region100
        $region99: #{tpu_custom_call.1} parent=91 // pred_region
          %s2345 = sand.u32 %s325, 1
          %s2346 = scalar_lea.sflag [#allocation12], %s2345
          %s2347 = sand.u32 %s325, 1
          %s2348 = smul.addr %s2347, 32
          %s2349 = scalar_lea.vmem [#allocation11], %s2348
          %2350 = dma.done %s2346, 512
        $region100: #{tpu_custom_call.1} parent=91 // pred_fallthru
          _
      $region92: #{tpu_custom_call.1} parent=5 // pred_fallthru
        _
    $region6: #{tpu_custom_call.1} parent=1 // loop_footer
      %s32 = sadd.s32 1, %s28
    $region7: #{tpu_custom_call.1} parent=1 // loop_footer_branch
      %27 = sbr.rel target = $region3
    $region8: #{tpu_custom_call.1} parent=1 // loop_exit
      _
    %2351 = vsyncpa [#allocation5], 1
    %s2352 = scalar_lea.sflag [#allocation5], 1
    %2353 = vsyncpa %s2352, 1
    %2354 = vsyncpa [#allocation8], 1
    %2355 = vsyncpa [#allocation6], 1
    %s2356 = scalar_lea.sflag [#allocation6], 1
    %2357 = vsyncpa %s2356, 1
    %2358 = vsyncpa [#allocation12], 1
    %s2359 = scalar_lea.sflag [#allocation12], 1
    %2360 = vsyncpa %s2359, 1

</llo_original>
